<compile_context>
chip_gen: v5e
topology: v5e:2x2
jax: 0.10.0
libtpu: 0.0.40
codegen_flags: <defaults>
</compile_context>

<pallas_src>
import functools
import math

import jax
import jax.numpy as jnp
from jax.experimental import pallas as pl
from jax.experimental.pallas import tpu as pltpu

TM_MM = 256                      # matmul rows-per-tile (MXU-friendly)
TM_ELT = 512                     # rows-per-tile for memory-bound elementwise kernels
VMEM_LIMIT = 32 * 1024 * 1024    # explicit scoped-VMEM budget (safe on v5e/v6e/v7x)


# ----------------------------------------------------------------------------
# Pallas kernels
# ----------------------------------------------------------------------------
def _bn_stats_kernel(x_ref, psum_ref, psq_ref):
    """Per-tile partial channel sums over a lane-dense (TM, G*C) block."""
    x = x_ref[...].astype(jnp.float32)
    psum_ref[...] = jnp.sum(x, axis=0, keepdims=True)[None]
    psq_ref[...] = jnp.sum(x * x, axis=0, keepdims=True)[None]


def _affine_kernel(x_ref, scale_ref, shift_ref, o_ref, *, relu):
    """y = x * scale + shift (+ ReLU) on a lane-dense block — fused BN apply."""
    y = x_ref[...].astype(jnp.float32) * scale_ref[...] + shift_ref[...]
    if relu:
        y = jnp.maximum(y, 0.0)
    o_ref[...] = y.astype(o_ref.dtype)


def _matmul_stats_kernel(a_ref, w_ref, o_ref, psum_ref, psq_ref):
    """o = a @ w (bf16 in, f32 acc) + fused per-tile BN partial statistics."""
    acc = jnp.dot(a_ref[...], w_ref[...], preferred_element_type=jnp.float32)
    o_ref[...] = acc.astype(o_ref.dtype)
    psum_ref[...] = jnp.sum(acc, axis=0, keepdims=True)[None]
    psq_ref[...] = jnp.sum(acc * acc, axis=0, keepdims=True)[None]


def _matmul_skip_add_kernel(a_ref, w_ref, b_ref, s_ref, scale_ref, shift_ref,
                            o_ref):
    """Fused tail: o = (a @ w + b2) + (skip * scale3 + shift3).

    conv2 matmul + its bias + BN3 affine on the skip branch + residual add in
    a single epilogue pass (no intermediate conv2 slab round-trips HBM).
    """
    acc = jnp.dot(a_ref[...], w_ref[...], preferred_element_type=jnp.float32)
    skip = s_ref[...].astype(jnp.float32) * scale_ref[...] + shift_ref[...]
    o_ref[...] = (acc + b_ref[...] + skip).astype(o_ref.dtype)


# ----------------------------------------------------------------------------
# Small helpers
# ----------------------------------------------------------------------------
def _row_tile(m, cap):
    """Largest sublane-friendly row tile <= cap that divides m (or full m)."""
    if m <= cap:
        return m
    t = cap
    while t >= 8:
        if m % t == 0 and t % 8 == 0:
            return t
        t -= 8
    return m


def _dense_group(m, c):
    """Group factor G so the (M, C) slab reshapes to lane-dense (M/G, G*C)."""
    g = 128 // math.gcd(c, 128)
    if m % g == 0:
        return g
    return 1  # fallback: lane-sparse but still correct


def _tile_dense(v, g):
    """Per-channel (C,) vector -> (1, G*C) vector matching the dense layout."""
    return jnp.tile(v.reshape(1, -1), (1, g))


def _channel_stats_from_partials(psum, psq, count, c):
    """(T,1,G*C) partial sums -> per-channel mean / biased var."""
    s = psum.reshape(-1, c).sum(axis=0)
    sq = psq.reshape(-1, c).sum(axis=0)
    mean = s / count
    var = sq / count - mean * mean  # biased var (PyTorch train-mode forward)
    # TODO(synk): use a two-pass / Welford reduction if activations are far from
    # zero-mean (E[x^2]-E[x]^2 cancels catastrophically in that regime).
    return mean, var


def _bn_scale_shift(mean, var, gamma, beta, eps=1e-5):
    scale = gamma / jnp.sqrt(var + eps)
    shift = beta - mean * scale
    return scale, shift


# ----------------------------------------------------------------------------
# Pallas wrappers
# ----------------------------------------------------------------------------
def bn_stats_dense(xd):
    md, cd = xd.shape
    tm = _row_tile(md, TM_ELT)
    nt = md // tm
    return pl.pallas_call(
        _bn_stats_kernel,
        out_shape=(
            jax.ShapeDtypeStruct((nt, 1, cd), jnp.float32),
            jax.ShapeDtypeStruct((nt, 1, cd), jnp.float32),
        ),
        grid=(nt,),
        in_specs=[pl.BlockSpec((tm, cd), lambda i: (i, 0))],
        out_specs=(
            pl.BlockSpec((1, 1, cd), lambda i: (i, 0, 0)),
            pl.BlockSpec((1, 1, cd), lambda i: (i, 0, 0)),
        ),
        compiler_params=pltpu.CompilerParams(
            dimension_semantics=("parallel",), vmem_limit_bytes=VMEM_LIMIT
        ),
    )(xd)


def affine_dense(xd, scale_d, shift_d, relu, out_dtype):
    md, cd = xd.shape
    tm = _row_tile(md, TM_ELT)
    return pl.pallas_call(
        functools.partial(_affine_kernel, relu=relu),
        out_shape=jax.ShapeDtypeStruct((md, cd), out_dtype),
        grid=(md // tm,),
        in_specs=[
            pl.BlockSpec((tm, cd), lambda i: (i, 0)),
            pl.BlockSpec((1, cd), lambda i: (0, 0)),
            pl.BlockSpec((1, cd), lambda i: (0, 0)),
        ],
        out_specs=pl.BlockSpec((tm, cd), lambda i: (i, 0)),
        compiler_params=pltpu.CompilerParams(
            dimension_semantics=("parallel",), vmem_limit_bytes=VMEM_LIMIT
        ),
    )(xd, scale_d, shift_d)


def matmul_stats(a, w, out_dtype=jnp.bfloat16):
    """a @ w with fused per-tile BN partial statistics as side outputs."""
    m, k = a.shape
    kw, n = w.shape
    assert k == kw
    tm = _row_tile(m, TM_MM)
    nt = m // tm
    return pl.pallas_call(
        _matmul_stats_kernel,
        out_shape=(
            jax.ShapeDtypeStruct((m, n), out_dtype),
            jax.ShapeDtypeStruct((nt, 1, n), jnp.float32),
            jax.ShapeDtypeStruct((nt, 1, n), jnp.float32),
        ),
        grid=(nt,),
        in_specs=[
            pl.BlockSpec((tm, k), lambda i: (i, 0)),
            pl.BlockSpec((k, n), lambda i: (0, 0)),
        ],
        out_specs=(
            pl.BlockSpec((tm, n), lambda i: (i, 0)),
            pl.BlockSpec((1, 1, n), lambda i: (i, 0, 0)),
            pl.BlockSpec((1, 1, n), lambda i: (i, 0, 0)),
        ),
        compiler_params=pltpu.CompilerParams(
            dimension_semantics=("parallel",), vmem_limit_bytes=VMEM_LIMIT
        ),
    )(a, w)


def matmul_skip_add(a, w, b, skip, scale3, shift3):
    """Fused conv2 matmul + bias + BN3 affine(skip) + residual add."""
    m, k = a.shape
    kw, n = w.shape
    assert k == kw and skip.shape == (m, n)
    tm = _row_tile(m, TM_MM)
    return pl.pallas_call(
        _matmul_skip_add_kernel,
        out_shape=jax.ShapeDtypeStruct((m, n), jnp.float32),
        grid=(m // tm,),
        in_specs=[
            pl.BlockSpec((tm, k), lambda i: (i, 0)),
            pl.BlockSpec((k, n), lambda i: (0, 0)),
            pl.BlockSpec((1, n), lambda i: (0, 0)),
            pl.BlockSpec((tm, n), lambda i: (i, 0)),
            pl.BlockSpec((1, n), lambda i: (0, 0)),
            pl.BlockSpec((1, n), lambda i: (0, 0)),
        ],
        out_specs=pl.BlockSpec((tm, n), lambda i: (i, 0)),
        compiler_params=pltpu.CompilerParams(
            dimension_semantics=("parallel",), vmem_limit_bytes=VMEM_LIMIT
        ),
    )(a, w, b, skip, scale3, shift3)


# ----------------------------------------------------------------------------
# Glue: im2col, BN apply, conv, ResidualConv forward
# ----------------------------------------------------------------------------
def im2col_3d(x, stride, padding):
    """x: (N, D, H, W, C) bf16 -> (N*Do*Ho*Wo, 27*C) bf16 patch matrix."""
    # TODO(synk): fuse this 27-tap gather into the matmul grid instead of
    # materializing the patch matrix in HBM.
    N, D, H, W, C = x.shape
    p, s = padding, stride
    xp = jnp.pad(x, ((0, 0), (p, p), (p, p), (p, p), (0, 0)))
    Do = (D + 2 * p - 3) // s + 1
    Ho = (H + 2 * p - 3) // s + 1
    Wo = (W + 2 * p - 3) // s + 1
    taps = []
    for kd in range(3):
        for kh in range(3):
            for kw in range(3):
                taps.append(
                    xp[:,
                       kd:kd + (Do - 1) * s + 1:s,
                       kh:kh + (Ho - 1) * s + 1:s,
                       kw:kw + (Wo - 1) * s + 1:s, :]
                )
    patches = jnp.stack(taps, axis=-2)          # (N, Do, Ho, Wo, 27, C)
    return patches.reshape(N * Do * Ho * Wo, 27 * C), (N, Do, Ho, Wo)


def batchnorm_relu_input(x2d, gamma, beta, out_dtype=jnp.bfloat16):
    """Train-mode BN + ReLU on the raw input slab, lane-dense, bf16 output."""
    m, c = x2d.shape
    g = _dense_group(m, c)
    xd = x2d.reshape(m // g, g * c)
    psum, psq = bn_stats_dense(xd)
    mean, var = _channel_stats_from_partials(psum, psq, m, c)
    scale, shift = _bn_scale_shift(mean, var, gamma, beta)
    yd = affine_dense(xd, _tile_dense(scale, g), _tile_dense(shift, g),
                      relu=True, out_dtype=out_dtype)
    return yd.reshape(m, c)


def conv3d_bn_stats(x_bf16, w_mat, stride, padding):
    """Conv3d (no bias, bf16 MXU) with fused per-tile BN partial statistics."""
    patches, dims = im2col_3d(x_bf16, stride, padding)
    out, psum, psq = matmul_stats(patches, w_mat)
    return out, psum, psq, dims


def prepare_params(params):
    """Hoist weight re-layout + bf16 cast out of the jitted forward."""
    def w_mat(w):  # (C_out, C_in, 3, 3, 3) -> (27*C_in, C_out) bf16, tap-major
        c_out, c_in = w.shape[0], w.shape[1]
        return (jnp.transpose(w, (2, 3, 4, 1, 0))
                .reshape(27 * c_in, c_out).astype(jnp.bfloat16))
    return {
        "bn1_g": params["bn1_g"], "bn1_b": params["bn1_b"],
        "bn2_g": params["bn2_g"], "bn2_b": params["bn2_b"],
        "bn3_g": params["bn3_g"], "bn3_b": params["bn3_b"],
        "w1m": w_mat(params["w1"]),
        "w2m": w_mat(params["w2"]),
        "b2": params["b2"].reshape(1, -1).astype(jnp.float32),
        "w3m": w_mat(params["w3"]),
        # b1 / b3 intentionally not used: they are exactly cancelled by the
        # train-mode BatchNorm that immediately follows conv1 / conv_skip.
    }


def residual_conv_forward(x_ncdhw, params, stride, padding):
    """Forward pass of ResidualConv.  Input/output layout: NCDHW (PyTorch)."""
    x = jnp.transpose(x_ncdhw, (0, 2, 3, 4, 1))          # -> NDHWC
    N, D, H, W, c_in = x.shape
    c_out = params["w1m"].shape[1]

    # --- conv_block: BN1 -> ReLU -> Conv1 -> BN2 -> ReLU --------------------
    h2d = batchnorm_relu_input(x.reshape(-1, c_in),
                               params["bn1_g"], params["bn1_b"])
    h = h2d.reshape(N, D, H, W, c_in)

    # Conv1 (bias dropped; BN2 stats fused into the matmul epilogue)
    c1, ps2, pq2, (n_, do, ho, wo) = conv3d_bn_stats(h, params["w1m"],
                                                     stride, padding)
    m1 = c1.shape[0]
    mean2, var2 = _channel_stats_from_partials(ps2, pq2, m1, c_out)
    scale2, shift2 = _bn_scale_shift(mean2, var2,
                                     params["bn2_g"], params["bn2_b"])
    g_out = _dense_group(m1, c_out)
    c1d = c1.reshape(m1 // g_out, g_out * c_out)
    h2 = affine_dense(c1d, _tile_dense(scale2, g_out), _tile_dense(shift2, g_out),
                      relu=True, out_dtype=jnp.bfloat16)
    h2 = h2.reshape(n_, do, ho, wo, c_out)

    # --- conv_skip: Conv3 (bias dropped) -> BN3 stats, fused -----------------
    s1, ps3, pq3, (_, ds, hs, ws) = conv3d_bn_stats(
        x.astype(jnp.bfloat16), params["w3m"], stride, 1)
    assert (ds, hs, ws) == (do, ho, wo), "branch shapes must match for the add"
    mean3, var3 = _channel_stats_from_partials(ps3, pq3, s1.shape[0], c_out)
    scale3, shift3 = _bn_scale_shift(mean3, var3,
                                     params["bn3_g"], params["bn3_b"])

    # --- fused tail: Conv2 matmul + b2 + BN3 affine on skip + residual add ---
    patches2, _ = im2col_3d(h2, stride=1, padding=1)
    out2d = matmul_skip_add(patches2, params["w2m"], params["b2"], s1,
                            scale3.reshape(1, -1), shift3.reshape(1, -1))
    out = out2d.reshape(n_, do, ho, wo, c_out)
    return jnp.transpose(out, (0, 4, 1, 2, 3))            # -> NCDHW


def init_params(key, c_in, c_out):
    ks = jax.random.split(key, 12)
    u = lambda k, shape, s=0.1: s * jax.random.normal(k, shape, jnp.float32)
    return {
        "bn1_g": 1.0 + u(ks[0], (c_in,)), "bn1_b": u(ks[1], (c_in,)),
        "w1": u(ks[2], (c_out, c_in, 3, 3, 3)), "b1": u(ks[3], (c_out,)),
        "bn2_g": 1.0 + u(ks[4], (c_out,)), "bn2_b": u(ks[5], (c_out,)),
        "w2": u(ks[6], (c_out, c_out, 3, 3, 3)), "b2": u(ks[7], (c_out,)),
        "w3": u(ks[8], (c_out, c_in, 3, 3, 3)), "b3": u(ks[9], (c_out,)),
        "bn3_g": 1.0 + u(ks[10], (c_out,)), "bn3_b": u(ks[11], (c_out,)),
    }


if __name__ == "__main__":
    key = jax.random.PRNGKey(0)
    k_x, k_p = jax.random.split(key)

    # ResidualConv(input_dim=4, output_dim=8, stride=1, padding=1)
    c_in, c_out, stride, padding = 4, 8, 1, 1
    x = jax.random.normal(k_x, (2, c_in, 8, 8, 8), jnp.float32)   # NCDHW
    params = prepare_params(init_params(k_p, c_in, c_out))        # outside jit

    fwd = jax.jit(functools.partial(residual_conv_forward,
                                    stride=stride, padding=padding))
    out = fwd(x, params)
    jax.block_until_ready(out)
    assert out.shape == (2, c_out, 8, 8, 8)
    print("KERNEL_OK")
</pallas_src>

<mosaic_0001>
module attributes {stable_mosaic.version = 11 : i64} {
  func.func @_bn_stats_kernel(%arg0: i32, %arg1: memref<32x128xf32, #tpu.memory_space<vmem>>, %arg2: memref<1x1x128xf32, #tpu.memory_space<vmem>>, %arg3: memref<1x1x128xf32, #tpu.memory_space<vmem>>) attributes {dimension_semantics = [#tpu.dimension_semantics<parallel>], iteration_bounds = array<i64: 1>, scalar_prefetch = 0 : i64, scratch_operands = 0 : i64, tpu.core_type = #tpu.core_type<tc>, window_params = [{transform_indices = @transform_0, window_bounds = array<i64: 32, 128>}, {transform_indices = @transform_1, window_bounds = array<i64: 1, 1, 128>}, {transform_indices = @transform_2, window_bounds = array<i64: 1, 1, 128>}]} {
    %c0 = arith.constant 0 : index
    %c0_0 = arith.constant 0 : index
    %0 = vector.load %arg1[%c0, %c0_0] : memref<32x128xf32, #tpu.memory_space<vmem>>, vector<32x128xf32>
    %cst = arith.constant dense<0.000000e+00> : vector<128xf32>
    %1 = vector.multi_reduction <add>, %0, %cst [0] : vector<32x128xf32> to vector<128xf32>
    %2 = vector.shape_cast %1 : vector<128xf32> to vector<1x128xf32>
    %3 = vector.shape_cast %2 : vector<1x128xf32> to vector<1x1x128xf32>
    %c0_1 = arith.constant 0 : index
    %c0_2 = arith.constant 0 : index
    %c0_3 = arith.constant 0 : index
    %4 = vector.load %arg2[%c0_1, %c0_2, %c0_3] : memref<1x1x128xf32, #tpu.memory_space<vmem>>, vector<1x1x128xf32>
    tpu.vector_store %arg2[%c0_1, %c0_2, %c0_3], %3 {strides = array<i32>} : memref<1x1x128xf32, #tpu.memory_space<vmem>>, vector<1x1x128xf32>,
    %5 = arith.mulf %0, %0 : vector<32x128xf32>
    %cst_4 = arith.constant dense<0.000000e+00> : vector<128xf32>
    %6 = vector.multi_reduction <add>, %5, %cst_4 [0] : vector<32x128xf32> to vector<128xf32>
    %7 = vector.shape_cast %6 : vector<128xf32> to vector<1x128xf32>
    %8 = vector.shape_cast %7 : vector<1x128xf32> to vector<1x1x128xf32>
    %c0_5 = arith.constant 0 : index
    %c0_6 = arith.constant 0 : index
    %c0_7 = arith.constant 0 : index
    %9 = vector.load %arg3[%c0_5, %c0_6, %c0_7] : memref<1x1x128xf32, #tpu.memory_space<vmem>>, vector<1x1x128xf32>
    tpu.vector_store %arg3[%c0_5, %c0_6, %c0_7], %8 {strides = array<i32>} : memref<1x1x128xf32, #tpu.memory_space<vmem>>, vector<1x1x128xf32>,
    return
  }
  func.func @transform_0(%arg0: i32) -> (i32, i32) {
    %c0_i32 = arith.constant 0 : i32
    %c0_i32_0 = arith.constant 0 : i32
    return %arg0, %c0_i32 : i32, i32
  }
  func.func @transform_1(%arg0: i32) -> (i32, i32, i32) {
    %c0_i32 = arith.constant 0 : i32
    %c0_i32_0 = arith.constant 0 : i32
    %c0_i32_1 = arith.constant 0 : i32
    return %arg0, %c0_i32, %c0_i32_0 : i32, i32, i32
  }
  func.func @transform_2(%arg0: i32) -> (i32, i32, i32) {
    %c0_i32 = arith.constant 0 : i32
    %c0_i32_0 = arith.constant 0 : i32
    %c0_i32_1 = arith.constant 0 : i32
    return %arg0, %c0_i32, %c0_i32_0 : i32, i32, i32
  }
}

module attributes {stable_mosaic.version = 11 : i64} {
  func.func @_affine_kernel(%arg0: i32, %arg1: memref<32x128xf32, #tpu.memory_space<vmem>>, %arg2: memref<1x128xf32, #tpu.memory_space<vmem>>, %arg3: memref<1x128xf32, #tpu.memory_space<vmem>>, %arg4: memref<32x128xbf16, #tpu.memory_space<vmem>>) attributes {dimension_semantics = [#tpu.dimension_semantics<parallel>], iteration_bounds = array<i64: 1>, scalar_prefetch = 0 : i64, scratch_operands = 0 : i64, tpu.core_type = #tpu.core_type<tc>, window_params = [{transform_indices = @transform_0, window_bounds = array<i64: 32, 128>}, {pipeline_mode = #tpu.pipeline_mode<synchronous>, transform_indices = @transform_1, window_bounds = array<i64: 1, 128>}, {pipeline_mode = #tpu.pipeline_mode<synchronous>, transform_indices = @transform_2, window_bounds = array<i64: 1, 128>}, {transform_indices = @transform_3, window_bounds = array<i64: 32, 128>}]} {
    %c0 = arith.constant 0 : index
    %c0_0 = arith.constant 0 : index
    %0 = vector.load %arg1[%c0, %c0_0] : memref<32x128xf32, #tpu.memory_space<vmem>>, vector<32x128xf32>
    %c0_1 = arith.constant 0 : index
    %c0_2 = arith.constant 0 : index
    %1 = vector.load %arg2[%c0_1, %c0_2] : memref<1x128xf32, #tpu.memory_space<vmem>>, vector<1x128xf32>
    %2 = vector.broadcast %1 : vector<1x128xf32> to vector<32x128xf32>
    %3 = arith.mulf %0, %2 : vector<32x128xf32>
    %c0_3 = arith.constant 0 : index
    %c0_4 = arith.constant 0 : index
    %4 = vector.load %arg3[%c0_3, %c0_4] : memref<1x128xf32, #tpu.memory_space<vmem>>, vector<1x128xf32>
    %5 = vector.broadcast %4 : vector<1x128xf32> to vector<32x128xf32>
    %6 = arith.addf %3, %5 : vector<32x128xf32>
    %cst = arith.constant 0.000000e+00 : f32
    %7 = vector.broadcast %cst : f32 to vector<32x128xf32>
    %8 = arith.maximumf %6, %7 : vector<32x128xf32>
    %9 = arith.truncf %8 : vector<32x128xf32> to vector<32x128xbf16>
    %c0_5 = arith.constant 0 : index
    %c0_6 = arith.constant 0 : index
    %10 = vector.load %arg4[%c0_5, %c0_6] : memref<32x128xbf16, #tpu.memory_space<vmem>>, vector<32x128xbf16>
    tpu.vector_store %arg4[%c0_5, %c0_6], %9 {strides = array<i32>} : memref<32x128xbf16, #tpu.memory_space<vmem>>, vector<32x128xbf16>,
    return
  }
  func.func @transform_0(%arg0: i32) -> (i32, i32) {
    %c0_i32 = arith.constant 0 : i32
    %c0_i32_0 = arith.constant 0 : i32
    return %arg0, %c0_i32 : i32, i32
  }
  func.func @transform_1(%arg0: i32) -> (i32, i32) {
    %c0_i32 = arith.constant 0 : i32
    %c0_i32_0 = arith.constant 0 : i32
    %c0_i32_1 = arith.constant 0 : i32
    return %c0_i32, %c0_i32_0 : i32, i32
  }
  func.func @transform_2(%arg0: i32) -> (i32, i32) {
    %c0_i32 = arith.constant 0 : i32
    %c0_i32_0 = arith.constant 0 : i32
    %c0_i32_1 = arith.constant 0 : i32
    return %c0_i32, %c0_i32_0 : i32, i32
  }
  func.func @transform_3(%arg0: i32) -> (i32, i32) {
    %c0_i32 = arith.constant 0 : i32
    %c0_i32_0 = arith.constant 0 : i32
    return %arg0, %c0_i32 : i32, i32
  }
}

module attributes {stable_mosaic.version = 11 : i64} {
  func.func @_matmul_stats_kernel(%arg0: i32, %arg1: memref<256x108xbf16, #tpu.memory_space<vmem>>, %arg2: memref<108x8xbf16, #tpu.memory_space<vmem>>, %arg3: memref<256x8xbf16, #tpu.memory_space<vmem>>, %arg4: memref<1x1x8xf32, #tpu.memory_space<vmem>>, %arg5: memref<1x1x8xf32, #tpu.memory_space<vmem>>) attributes {dimension_semantics = [#tpu.dimension_semantics<parallel>], iteration_bounds = array<i64: 4>, scalar_prefetch = 0 : i64, scratch_operands = 0 : i64, tpu.core_type = #tpu.core_type<tc>, window_params = [{transform_indices = @transform_0, window_bounds = array<i64: 256, 108>}, {pipeline_mode = #tpu.pipeline_mode<synchronous>, transform_indices = @transform_1, window_bounds = array<i64: 108, 8>}, {transform_indices = @transform_2, window_bounds = array<i64: 256, 8>}, {transform_indices = @transform_3, window_bounds = array<i64: 1, 1, 8>}, {transform_indices = @transform_4, window_bounds = array<i64: 1, 1, 8>}]} {
    %c0 = arith.constant 0 : index
    %c0_0 = arith.constant 0 : index
    %0 = vector.load %arg1[%c0, %c0_0] : memref<256x108xbf16, #tpu.memory_space<vmem>>, vector<256x108xbf16>
    %c0_1 = arith.constant 0 : index
    %c0_2 = arith.constant 0 : index
    %1 = vector.load %arg2[%c0_1, %c0_2] : memref<108x8xbf16, #tpu.memory_space<vmem>>, vector<108x8xbf16>
    %cst = arith.constant dense<0.000000e+00> : vector<256x8xf32>
    %2 = tpu.matmul %0, %1, %cst {dimension_numbers = #tpu.dot_dimension_numbers<[1], [0], [0], [1], [0, 0, 1, 1], [], []>} : vector<256x108xbf16>, vector<108x8xbf16>, vector<256x8xf32> -> vector<256x8xf32>
    %3 = arith.truncf %2 : vector<256x8xf32> to vector<256x8xbf16>
    %c0_3 = arith.constant 0 : index
    %c0_4 = arith.constant 0 : index
    %4 = vector.load %arg3[%c0_3, %c0_4] : memref<256x8xbf16, #tpu.memory_space<vmem>>, vector<256x8xbf16>
    tpu.vector_store %arg3[%c0_3, %c0_4], %3 {strides = array<i32>} : memref<256x8xbf16, #tpu.memory_space<vmem>>, vector<256x8xbf16>,
    %cst_5 = arith.constant dense<0.000000e+00> : vector<8xf32>
    %5 = vector.multi_reduction <add>, %2, %cst_5 [0] : vector<256x8xf32> to vector<8xf32>
    %6 = vector.shape_cast %5 : vector<8xf32> to vector<1x8xf32>
    %7 = vector.shape_cast %6 : vector<1x8xf32> to vector<1x1x8xf32>
    %c0_6 = arith.constant 0 : index
    %c0_7 = arith.constant 0 : index
    %c0_8 = arith.constant 0 : index
    %8 = vector.load %arg4[%c0_6, %c0_7, %c0_8] : memref<1x1x8xf32, #tpu.memory_space<vmem>>, vector<1x1x8xf32>
    tpu.vector_store %arg4[%c0_6, %c0_7, %c0_8], %7 {strides = array<i32>} : memref<1x1x8xf32, #tpu.memory_space<vmem>>, vector<1x1x8xf32>,
    %9 = arith.mulf %2, %2 : vector<256x8xf32>
    %cst_9 = arith.constant dense<0.000000e+00> : vector<8xf32>
    %10 = vector.multi_reduction <add>, %9, %cst_9 [0] : vector<256x8xf32> to vector<8xf32>
    %11 = vector.shape_cast %10 : vector<8xf32> to vector<1x8xf32>
    %12 = vector.shape_cast %11 : vector<1x8xf32> to vector<1x1x8xf32>
    %c0_10 = arith.constant 0 : index
    %c0_11 = arith.constant 0 : index
    %c0_12 = arith.constant 0 : index
    %13 = vector.load %arg5[%c0_10, %c0_11, %c0_12] : memref<1x1x8xf32, #tpu.memory_space<vmem>>, vector<1x1x8xf32>
    tpu.vector_store %arg5[%c0_10, %c0_11, %c0_12], %12 {strides = array<i32>} : memref<1x1x8xf32, #tpu.memory_space<vmem>>, vector<1x1x8xf32>,
    return
  }
  func.func @transform_0(%arg0: i32) -> (i32, i32) {
    %c0_i32 = arith.constant 0 : i32
    %c0_i32_0 = arith.constant 0 : i32
    return %arg0, %c0_i32 : i32, i32
  }
  func.func @transform_1(%arg0: i32) -> (i32, i32) {
    %c0_i32 = arith.constant 0 : i32
    %c0_i32_0 = arith.constant 0 : i32
    %c0_i32_1 = arith.constant 0 : i32
    return %c0_i32, %c0_i32_0 : i32, i32
  }
  func.func @transform_2(%arg0: i32) -> (i32, i32) {
    %c0_i32 = arith.constant 0 : i32
    %c0_i32_0 = arith.constant 0 : i32
    return %arg0, %c0_i32 : i32, i32
  }
  func.func @transform_3(%arg0: i32) -> (i32, i32, i32) {
    %c0_i32 = arith.constant 0 : i32
    %c0_i32_0 = arith.constant 0 : i32
    %c0_i32_1 = arith.constant 0 : i32
    return %arg0, %c0_i32, %c0_i32_0 : i32, i32, i32
  }
  func.func @transform_4(%arg0: i32) -> (i32, i32, i32) {
    %c0_i32 = arith.constant 0 : i32
    %c0_i32_0 = arith.constant 0 : i32
    %c0_i32_1 = arith.constant 0 : i32
    return %arg0, %c0_i32, %c0_i32_0 : i32, i32, i32
  }
}

module attributes {stable_mosaic.version = 11 : i64} {
  func.func @_affine_kernel(%arg0: i32, %arg1: memref<64x128xbf16, #tpu.memory_space<vmem>>, %arg2: memref<1x128xf32, #tpu.memory_space<vmem>>, %arg3: memref<1x128xf32, #tpu.memory_space<vmem>>, %arg4: memref<64x128xbf16, #tpu.memory_space<vmem>>) attributes {dimension_semantics = [#tpu.dimension_semantics<parallel>], iteration_bounds = array<i64: 1>, scalar_prefetch = 0 : i64, scratch_operands = 0 : i64, tpu.core_type = #tpu.core_type<tc>, window_params = [{transform_indices = @transform_0, window_bounds = array<i64: 64, 128>}, {pipeline_mode = #tpu.pipeline_mode<synchronous>, transform_indices = @transform_1, window_bounds = array<i64: 1, 128>}, {pipeline_mode = #tpu.pipeline_mode<synchronous>, transform_indices = @transform_2, window_bounds = array<i64: 1, 128>}, {transform_indices = @transform_3, window_bounds = array<i64: 64, 128>}]} {
    %c0 = arith.constant 0 : index
    %c0_0 = arith.constant 0 : index
    %0 = vector.load %arg1[%c0, %c0_0] : memref<64x128xbf16, #tpu.memory_space<vmem>>, vector<64x128xbf16>
    %1 = arith.extf %0 : vector<64x128xbf16> to vector<64x128xf32>
    %c0_1 = arith.constant 0 : index
    %c0_2 = arith.constant 0 : index
    %2 = vector.load %arg2[%c0_1, %c0_2] : memref<1x128xf32, #tpu.memory_space<vmem>>, vector<1x128xf32>
    %3 = vector.broadcast %2 : vector<1x128xf32> to vector<64x128xf32>
    %4 = arith.mulf %1, %3 : vector<64x128xf32>
    %c0_3 = arith.constant 0 : index
    %c0_4 = arith.constant 0 : index
    %5 = vector.load %arg3[%c0_3, %c0_4] : memref<1x128xf32, #tpu.memory_space<vmem>>, vector<1x128xf32>
    %6 = vector.broadcast %5 : vector<1x128xf32> to vector<64x128xf32>
    %7 = arith.addf %4, %6 : vector<64x128xf32>
    %cst = arith.constant 0.000000e+00 : f32
    %8 = vector.broadcast %cst : f32 to vector<64x128xf32>
    %9 = arith.maximumf %7, %8 : vector<64x128xf32>
    %10 = arith.truncf %9 : vector<64x128xf32> to vector<64x128xbf16>
    %c0_5 = arith.constant 0 : index
    %c0_6 = arith.constant 0 : index
    %11 = vector.load %arg4[%c0_5, %c0_6] : memref<64x128xbf16, #tpu.memory_space<vmem>>, vector<64x128xbf16>
    tpu.vector_store %arg4[%c0_5, %c0_6], %10 {strides = array<i32>} : memref<64x128xbf16, #tpu.memory_space<vmem>>, vector<64x128xbf16>,
    return
  }
  func.func @transform_0(%arg0: i32) -> (i32, i32) {
    %c0_i32 = arith.constant 0 : i32
    %c0_i32_0 = arith.constant 0 : i32
    return %arg0, %c0_i32 : i32, i32
  }
  func.func @transform_1(%arg0: i32) -> (i32, i32) {
    %c0_i32 = arith.constant 0 : i32
    %c0_i32_0 = arith.constant 0 : i32
    %c0_i32_1 = arith.constant 0 : i32
    return %c0_i32, %c0_i32_0 : i32, i32
  }
  func.func @transform_2(%arg0: i32) -> (i32, i32) {
    %c0_i32 = arith.constant 0 : i32
    %c0_i32_0 = arith.constant 0 : i32
    %c0_i32_1 = arith.constant 0 : i32
    return %c0_i32, %c0_i32_0 : i32, i32
  }
  func.func @transform_3(%arg0: i32) -> (i32, i32) {
    %c0_i32 = arith.constant 0 : i32
    %c0_i32_0 = arith.constant 0 : i32
    return %arg0, %c0_i32 : i32, i32
  }
}

module attributes {stable_mosaic.version = 11 : i64} {
  func.func @_matmul_skip_add_kernel(%arg0: i32, %arg1: memref<256x216xbf16, #tpu.memory_space<vmem>>, %arg2: memref<216x8xbf16, #tpu.memory_space<vmem>>, %arg3: memref<1x8xf32, #tpu.memory_space<vmem>>, %arg4: memref<256x8xbf16, #tpu.memory_space<vmem>>, %arg5: memref<1x8xf32, #tpu.memory_space<vmem>>, %arg6: memref<1x8xf32, #tpu.memory_space<vmem>>, %arg7: memref<256x8xf32, #tpu.memory_space<vmem>>) attributes {dimension_semantics = [#tpu.dimension_semantics<parallel>], iteration_bounds = array<i64: 4>, scalar_prefetch = 0 : i64, scratch_operands = 0 : i64, tpu.core_type = #tpu.core_type<tc>, window_params = [{transform_indices = @transform_0, window_bounds = array<i64: 256, 216>}, {pipeline_mode = #tpu.pipeline_mode<synchronous>, transform_indices = @transform_1, window_bounds = array<i64: 216, 8>}, {pipeline_mode = #tpu.pipeline_mode<synchronous>, transform_indices = @transform_2, window_bounds = array<i64: 1, 8>}, {transform_indices = @transform_3, window_bounds = array<i64: 256, 8>}, {pipeline_mode = #tpu.pipeline_mode<synchronous>, transform_indices = @transform_4, window_bounds = array<i64: 1, 8>}, {pipeline_mode = #tpu.pipeline_mode<synchronous>, transform_indices = @transform_5, window_bounds = array<i64: 1, 8>}, {transform_indices = @transform_6, window_bounds = array<i64: 256, 8>}]} {
    %c0 = arith.constant 0 : index
    %c0_0 = arith.constant 0 : index
    %0 = vector.load %arg1[%c0, %c0_0] : memref<256x216xbf16, #tpu.memory_space<vmem>>, vector<256x216xbf16>
    %c0_1 = arith.constant 0 : index
    %c0_2 = arith.constant 0 : index
    %1 = vector.load %arg2[%c0_1, %c0_2] : memref<216x8xbf16, #tpu.memory_space<vmem>>, vector<216x8xbf16>
    %cst = arith.constant dense<0.000000e+00> : vector<256x8xf32>
    %2 = tpu.matmul %0, %1, %cst {dimension_numbers = #tpu.dot_dimension_numbers<[1], [0], [0], [1], [0, 0, 1, 1], [], []>} : vector<256x216xbf16>, vector<216x8xbf16>, vector<256x8xf32> -> vector<256x8xf32>
    %c0_3 = arith.constant 0 : index
    %c0_4 = arith.constant 0 : index
    %3 = vector.load %arg4[%c0_3, %c0_4] : memref<256x8xbf16, #tpu.memory_space<vmem>>, vector<256x8xbf16>
    %4 = arith.extf %3 : vector<256x8xbf16> to vector<256x8xf32>
    %c0_5 = arith.constant 0 : index
    %c0_6 = arith.constant 0 : index
    %5 = vector.load %arg5[%c0_5, %c0_6] : memref<1x8xf32, #tpu.memory_space<vmem>>, vector<1x8xf32>
    %6 = vector.broadcast %5 : vector<1x8xf32> to vector<256x8xf32>
    %7 = arith.mulf %4, %6 : vector<256x8xf32>
    %c0_7 = arith.constant 0 : index
    %c0_8 = arith.constant 0 : index
    %8 = vector.load %arg6[%c0_7, %c0_8] : memref<1x8xf32, #tpu.memory_space<vmem>>, vector<1x8xf32>
    %9 = vector.broadcast %8 : vector<1x8xf32> to vector<256x8xf32>
    %10 = arith.addf %7, %9 : vector<256x8xf32>
    %c0_9 = arith.constant 0 : index
    %c0_10 = arith.constant 0 : index
    %11 = vector.load %arg3[%c0_9, %c0_10] : memref<1x8xf32, #tpu.memory_space<vmem>>, vector<1x8xf32>
    %12 = vector.broadcast %11 : vector<1x8xf32> to vector<256x8xf32>
    %13 = arith.addf %2, %12 : vector<256x8xf32>
    %14 = arith.addf %13, %10 : vector<256x8xf32>
    %c0_11 = arith.constant 0 : index
    %c0_12 = arith.constant 0 : index
    %15 = vector.load %arg7[%c0_11, %c0_12] : memref<256x8xf32, #tpu.memory_space<vmem>>, vector<256x8xf32>
    tpu.vector_store %arg7[%c0_11, %c0_12], %14 {strides = array<i32>} : memref<256x8xf32, #tpu.memory_space<vmem>>, vector<256x8xf32>,
    return
  }
  func.func @transform_0(%arg0: i32) -> (i32, i32) {
    %c0_i32 = arith.constant 0 : i32
    %c0_i32_0 = arith.constant 0 : i32
    return %arg0, %c0_i32 : i32, i32
  }
  func.func @transform_1(%arg0: i32) -> (i32, i32) {
    %c0_i32 = arith.constant 0 : i32
    %c0_i32_0 = arith.constant 0 : i32
    %c0_i32_1 = arith.constant 0 : i32
    return %c0_i32, %c0_i32_0 : i32, i32
  }
  func.func @transform_2(%arg0: i32) -> (i32, i32) {
    %c0_i32 = arith.constant 0 : i32
    %c0_i32_0 = arith.constant 0 : i32
    %c0_i32_1 = arith.constant 0 : i32
    return %c0_i32, %c0_i32_0 : i32, i32
  }
  func.func @transform_3(%arg0: i32) -> (i32, i32) {
    %c0_i32 = arith.constant 0 : i32
    %c0_i32_0 = arith.constant 0 : i32
    return %arg0, %c0_i32 : i32, i32
  }
  func.func @transform_4(%arg0: i32) -> (i32, i32) {
    %c0_i32 = arith.constant 0 : i32
    %c0_i32_0 = arith.constant 0 : i32
    %c0_i32_1 = arith.constant 0 : i32
    return %c0_i32, %c0_i32_0 : i32, i32
  }
  func.func @transform_5(%arg0: i32) -> (i32, i32) {
    %c0_i32 = arith.constant 0 : i32
    %c0_i32_0 = arith.constant 0 : i32
    %c0_i32_1 = arith.constant 0 : i32
    return %c0_i32, %c0_i32_0 : i32, i32
  }
  func.func @transform_6(%arg0: i32) -> (i32, i32) {
    %c0_i32 = arith.constant 0 : i32
    %c0_i32_0 = arith.constant 0 : i32
    return %arg0, %c0_i32 : i32, i32
  }
}

</mosaic_0001>

<llo_original>
// kernel: residual_conv_forward.6
$region0: #{residual_conv_forward.6}
  #allocation0 [shape = 'u32[]', space=smem, size = 0x4, offset = 0x4, fixed_abs, tag = 'smem constant byte address 0x4 - core index']
  #allocation1 [shape = 'u32[72,128]{1,0:T(1,128)}', space=vmem, size = 0x9000, scoped, tag = 'internal scratch']
  %s0 = inlined_call_operand.vmem [shape: f32[32,128], index: 0, kind: input, shape index: {}]
  %s1 = inlined_call_operand.vmem [shape: f32[1,1,128], index: 1, kind: output, shape index: {0}]
  %s2 = inlined_call_operand.vmem [shape: f32[1,1,128], index: 2, kind: output, shape index: {1}]
  %3 = xla_tuple %s1, %s2
  %s4 = sld [smem:[#allocation0]]
  $region22: #{residual_conv_forward.6} parent=0
    _
  %s6 = ssub.s32 1, %s4
  %s7 = scalar_select 0, %s6, %s4
  // Predicated region
  $region2: #{residual_conv_forward.6} parent=0 // pred_check
    _
  $region3: #{residual_conv_forward.6} parent=0 // pred_check_branch
    %9 = sbr.rel (0) target = $region5
  $region4: #{residual_conv_forward.6} parent=0 // pred_region
    _
  $region5: #{residual_conv_forward.6} parent=0 // pred_fallthru
    _
  %v10 = vld [vmem:[%s0] sm:$0xff]
  %v11 = vld [vmem:[%s0 + $0x8] sm:$0xff]
  %v12 = vld [vmem:[%s0 + $0x10] sm:$0xff]
  %v13 = vld [vmem:[%s0 + $0x18] sm:$0xff]
  %v14 = vadd.f32 %v10, %v11
  %v15 = vadd.f32 %v14, %v12
  %v16 = vadd.f32 %v15, %v13
  %v17 = vrot.slane %v16, 4
  %v18 = vadd.f32 %v16, %v17
  %v19 = vrot.slane %v18, 2
  %v20 = vadd.f32 %v18, %v19
  %v21 = vrot.slane %v20, 1
  %v22 = vadd.f32 %v20, %v21
  %23 = vst [vmem:[%s1] sm:$0x1] %v22
  %v24 = vmul.f32 %v10, %v10
  %v25 = vmul.f32 %v11, %v11
  %v26 = vmul.f32 %v12, %v12
  %v27 = vmul.f32 %v13, %v13
  %v28 = vadd.f32 %v24, %v25
  %v29 = vadd.f32 %v28, %v26
  %v30 = vadd.f32 %v29, %v27
  %v31 = vrot.slane %v30, 4
  %v32 = vadd.f32 %v30, %v31
  %v33 = vrot.slane %v32, 2
  %v34 = vadd.f32 %v32, %v33
  %v35 = vrot.slane %v34, 1
  %v36 = vadd.f32 %v34, %v35
  %37 = vst [vmem:[%s2] sm:$0x1] %v36
  // Predicated region
  $region6: #{residual_conv_forward.6} parent=0 // pred_check
    _
  $region7: #{residual_conv_forward.6} parent=0 // pred_check_branch
    %39 = sbr.rel (0) target = $region9
  $region8: #{residual_conv_forward.6} parent=0 // pred_region
    _
  $region9: #{residual_conv_forward.6} parent=0 // pred_fallthru
    _
  // Predicated region
  $region10: #{residual_conv_forward.6} parent=0 // pred_check
    _
  $region11: #{residual_conv_forward.6} parent=0 // pred_check_branch
    %41 = sbr.rel (0) target = $region13
  $region12: #{residual_conv_forward.6} parent=0 // pred_region
    _
  $region13: #{residual_conv_forward.6} parent=0 // pred_fallthru
    _
  // Predicated region
  $region14: #{residual_conv_forward.6} parent=0 // pred_check
    _
  $region15: #{residual_conv_forward.6} parent=0 // pred_check_branch
    %43 = sbr.rel (0) target = $region17
  $region16: #{residual_conv_forward.6} parent=0 // pred_region
    _
  $region17: #{residual_conv_forward.6} parent=0 // pred_fallthru
    _
  // Predicated region
  $region18: #{residual_conv_forward.6} parent=0 // pred_check
    _
  $region19: #{residual_conv_forward.6} parent=0 // pred_check_branch
    %45 = sbr.rel (0) target = $region21
  $region20: #{residual_conv_forward.6} parent=0 // pred_region
    _
  $region21: #{residual_conv_forward.6} parent=0 // pred_fallthru
    _

// kernel: residual_conv_forward.7
$region0: #{residual_conv_forward.7}
  #allocation0 [shape = 'u32[]', space=smem, size = 0x4, offset = 0x4, fixed_abs, tag = 'smem constant byte address 0x4 - core index']
  #allocation1 [shape = 'u32[72,128]{1,0:T(1,128)}', space=vmem, size = 0x9000, scoped, tag = 'internal scratch']
  %s0 = inlined_call_operand.vmem [shape: f32[32,128], index: 0, kind: input, shape index: {}]
  %s1 = inlined_call_operand.vmem [shape: f32[1,128], index: 1, kind: input, shape index: {}]
  %s2 = inlined_call_operand.vmem [shape: f32[1,128], index: 2, kind: input, shape index: {}]
  %s3 = inlined_call_operand.vmem [shape: bf16[32,128], index: 3, kind: output, shape index: {}]
  %s4 = sld [smem:[#allocation0]]
  $region22: #{residual_conv_forward.7} parent=0
    _
  %s6 = ssub.s32 1, %s4
  %s7 = scalar_select 0, %s6, %s4
  // Predicated region
  $region2: #{residual_conv_forward.7} parent=0 // pred_check
    _
  $region3: #{residual_conv_forward.7} parent=0 // pred_check_branch
    %9 = sbr.rel (0) target = $region5
  $region4: #{residual_conv_forward.7} parent=0 // pred_region
    _
  $region5: #{residual_conv_forward.7} parent=0 // pred_fallthru
    _
  // Predicated region
  $region6: #{residual_conv_forward.7} parent=0 // pred_check
    _
  $region7: #{residual_conv_forward.7} parent=0 // pred_check_branch
    %11 = sbr.rel (0) target = $region9
  $region8: #{residual_conv_forward.7} parent=0 // pred_region
    _
  $region9: #{residual_conv_forward.7} parent=0 // pred_fallthru
    _
  // Predicated region
  $region10: #{residual_conv_forward.7} parent=0 // pred_check
    _
  $region11: #{residual_conv_forward.7} parent=0 // pred_check_branch
    %13 = sbr.rel (0) target = $region13
  $region12: #{residual_conv_forward.7} parent=0 // pred_region
    _
  $region13: #{residual_conv_forward.7} parent=0 // pred_fallthru
    _
  %v14 = vld [vmem:[%s0] sm:$0xff]
  %v15 = vld [vmem:[%s0 + $0x8] sm:$0xff]
  %v16 = vld [vmem:[%s0 + $0x10] sm:$0xff]
  %v17 = vld [vmem:[%s0 + $0x18] sm:$0xff]
  %v18 = vld [vmem:[%s1] sm:$0x1]
  %v20 = vperm.slane %v18, 0
  %v22 = vmul.f32 %v14, %v20
  %v23 = vmul.f32 %v15, %v20
  %v24 = vmul.f32 %v16, %v20
  %v25 = vmul.f32 %v17, %v20
  %v26 = vld [vmem:[%s2] sm:$0x1]
  %v28 = vperm.slane %v26, 0
  %v30 = vadd.f32 %v22, %v28
  %v31 = vadd.f32 %v23, %v28
  %v32 = vadd.f32 %v24, %v28
  %v33 = vadd.f32 %v25, %v28
  %v34 = vmax.f32 %v30, 0.0
  %v35 = vmax.f32 %v31, 0.0
  %v36 = vmax.f32 %v32, 0.0
  %v37 = vmax.f32 %v33, 0.0
  %v38 = vpack.c.bf16 %v34, %v34
  %v39 = vpack.c.bf16 %v35, %v35
  %v40 = vpack.c.bf16 %v36, %v36
  %v41 = vpack.c.bf16 %v37, %v37
  %42 = vst [vmem:[%s3] sm:$0xf] %v38
  %43 = vst [vmem:[%s3 + $0x4] sm:$0xf] %v39
  %44 = vst [vmem:[%s3 + $0x8] sm:$0xf] %v40
  %45 = vst [vmem:[%s3 + $0xc] sm:$0xf] %v41
  // Predicated region
  $region14: #{residual_conv_forward.7} parent=0 // pred_check
    _
  $region15: #{residual_conv_forward.7} parent=0 // pred_check_branch
    %47 = sbr.rel (0) target = $region17
  $region16: #{residual_conv_forward.7} parent=0 // pred_region
    _
  $region17: #{residual_conv_forward.7} parent=0 // pred_fallthru
    _
  // Predicated region
  $region18: #{residual_conv_forward.7} parent=0 // pred_check
    _
  $region19: #{residual_conv_forward.7} parent=0 // pred_check_branch
    %49 = sbr.rel (0) target = $region21
  $region20: #{residual_conv_forward.7} parent=0 // pred_region
    _
  $region21: #{residual_conv_forward.7} parent=0 // pred_fallthru
    _

// kernel: residual_conv_forward.8
$region0: #{residual_conv_forward.8}
  #allocation0 [shape = 'u32[]', space=smem, size = 0x4, offset = 0x4, fixed_abs, tag = 'smem constant byte address 0x4 - core index']
  #allocation1 [shape = 'u32[72,128]{1,0:T(1,128)}', space=vmem, size = 0x9000, scoped, tag = 'internal scratch']
  %s0 = inlined_call_operand.vmem [shape: bf16[1024,108], index: 0, kind: input, shape index: {}]
  %s1 = inlined_call_operand.vmem [shape: bf16[108,8], index: 1, kind: input, shape index: {}]
  %s2 = inlined_call_operand.vmem [shape: bf16[1024,8], index: 2, kind: output, shape index: {0}]
  %s3 = inlined_call_operand.vmem [shape: f32[4,1,8], index: 3, kind: output, shape index: {1}]
  %s4 = inlined_call_operand.vmem [shape: f32[4,1,8], index: 4, kind: output, shape index: {2}]
  %5 = xla_tuple %s2, %s3, %s4
  %s6 = sld [smem:[#allocation0]]
  $region57: #{residual_conv_forward.8} parent=0
    _
  %s8 = ssub.s32 1, %s6
  %s9 = scalar_select 0, %s8, %s6
  loop: start=0, step=1, limit=6
  $region2: #{residual_conv_forward.8} parent=0 // loop_pre_header
    _
  $region3: #{residual_conv_forward.8} parent=0 // loop_header
    %s11 = sphi 0, %s15
    %p12 = scmp.ge.s32.totalorder %s11, 6
    %s21 = sphi 0, %s23
    %s24 = sphi 0, %s21
    %s25 = sphi 0, %s24
    %s41 = sphi 0, %s25
    %s45 = sphi 0, %s45
    %s47 = sphi 0, %s45
    %s48 = sphi 0, %s47
    %s62 = sphi 0, %s48
    %s68 = sphi 0, %s70
    %s71 = sphi 0, %s68
    %s72 = sphi 0, %s71
    %s88 = sphi 0, %s72
    %s94 = sphi 0, %s96
    %s97 = sphi 0, %s94
    %s98 = sphi 0, %s97
    %s114 = sphi 0, %s98
    %s120 = sphi 0, %s122
    %s123 = sphi 0, %s120
    %s124 = sphi 0, %s123
    %s140 = sphi 0, %s124
  $region4: #{residual_conv_forward.8} parent=0 // loop_header_branch
    %14 = sbr.rel (%p12) target = $region8
  $region5: #{residual_conv_forward.8} parent=0 // loop_body
    %s16 = ssub.s32 %s11, 1
    %s17 = ssub.s32 %s11, 2
    %s18 = sadd.s32 %s11, 1
    %s19 = ssub.s32 %s11, %s18
    %p20 = scmp.eq.s32.totalorder %s19, 0
    %s22 = sadd.s32 %s21, 1
    %s23 = scalar_select %p20, %s21, %s22
    %p26 = pneg %p20
    %p27 = scmp.eq.s32.totalorder %s11, 3
    %p28 = por %p26, %p27
    %p29 = scmp.ne.s32.totalorder %s21, %s24
    %p30 = scmp.eq.s32.totalorder %s11, 0
    %p31 = por %p29, %p30
    %p32 = scmp.ne.s32.totalorder %s21, %s24
    %p33 = scmp.eq.s32.totalorder %s16, 3
    %p34 = por %p32, %p33
    %p35 = scmp.ne.s32.totalorder %s24, %s25
    %p36 = scmp.eq.s32.totalorder %s16, 0
    %p37 = por %p35, %p36
    %p38 = scmp.ne.s32.totalorder %s24, %s25
    %p39 = scmp.eq.s32.totalorder %s17, 3
    %p40 = por %p38, %p39
    %p42 = scmp.ne.s32.totalorder %s25, %s41
    %p43 = scmp.eq.s32.totalorder %s17, 0
    %p44 = por %p42, %p43
    %s46 = sadd.s32 %s45, 1
    %p49 = scmp.eq.s32.totalorder %s11, 3
    %p50 = scmp.ne.s32.totalorder %s45, %s47
    %p51 = scmp.eq.s32.totalorder %s11, 0
    %p52 = por %p50, %p51
    %p53 = scmp.ne.s32.totalorder %s45, %s47
    %p54 = scmp.eq.s32.totalorder %s16, 3
    %p55 = por %p53, %p54
    %p56 = scmp.ne.s32.totalorder %s47, %s48
    %p57 = scmp.eq.s32.totalorder %s16, 0
    %p58 = por %p56, %p57
    %p59 = scmp.ne.s32.totalorder %s47, %s48
    %p60 = scmp.eq.s32.totalorder %s17, 3
    %p61 = por %p59, %p60
    %p63 = scmp.ne.s32.totalorder %s48, %s62
    %p64 = scmp.eq.s32.totalorder %s17, 0
    %p65 = por %p63, %p64
    %s66 = ssub.s32 %s11, %s18
    %p67 = scmp.eq.s32.totalorder %s66, 0
    %s69 = sadd.s32 %s68, 1
    %s70 = scalar_select %p67, %s68, %s69
    %p73 = pneg %p67
    %p74 = scmp.eq.s32.totalorder %s11, 3
    %p75 = por %p73, %p74
    %p76 = scmp.ne.s32.totalorder %s68, %s71
    %p77 = scmp.eq.s32.totalorder %s11, 0
    %p78 = por %p76, %p77
    %p79 = scmp.ne.s32.totalorder %s68, %s71
    %p80 = scmp.eq.s32.totalorder %s16, 3
    %p81 = por %p79, %p80
    %p82 = scmp.ne.s32.totalorder %s71, %s72
    %p83 = scmp.eq.s32.totalorder %s16, 0
    %p84 = por %p82, %p83
    %p85 = scmp.ne.s32.totalorder %s71, %s72
    %p86 = scmp.eq.s32.totalorder %s17, 3
    %p87 = por %p85, %p86
    %p89 = scmp.ne.s32.totalorder %s72, %s88
    %p90 = scmp.eq.s32.totalorder %s17, 0
    %p91 = por %p89, %p90
    %s92 = ssub.s32 %s11, %s18
    %p93 = scmp.eq.s32.totalorder %s92, 0
    %s95 = sadd.s32 %s94, 1
    %s96 = scalar_select %p93, %s94, %s95
    %p99 = pneg %p93
    %p100 = scmp.eq.s32.totalorder %s11, 3
    %p101 = por %p99, %p100
    %p102 = scmp.ne.s32.totalorder %s94, %s97
    %p103 = scmp.eq.s32.totalorder %s11, 0
    %p104 = por %p102, %p103
    %p105 = scmp.ne.s32.totalorder %s94, %s97
    %p106 = scmp.eq.s32.totalorder %s16, 3
    %p107 = por %p105, %p106
    %p108 = scmp.ne.s32.totalorder %s97, %s98
    %p109 = scmp.eq.s32.totalorder %s16, 0
    %p110 = por %p108, %p109
    %p111 = scmp.ne.s32.totalorder %s97, %s98
    %p112 = scmp.eq.s32.totalorder %s17, 3
    %p113 = por %p111, %p112
    %p115 = scmp.ne.s32.totalorder %s98, %s114
    %p116 = scmp.eq.s32.totalorder %s17, 0
    %p117 = por %p115, %p116
    %s118 = ssub.s32 %s11, %s18
    %p119 = scmp.eq.s32.totalorder %s118, 0
    %s121 = sadd.s32 %s120, 1
    %s122 = scalar_select %p119, %s120, %s121
    %p125 = pneg %p119
    %p126 = scmp.eq.s32.totalorder %s11, 3
    %p127 = por %p125, %p126
    %p128 = scmp.ne.s32.totalorder %s120, %s123
    %p129 = scmp.eq.s32.totalorder %s11, 0
    %p130 = por %p128, %p129
    %p131 = scmp.ne.s32.totalorder %s120, %s123
    %p132 = scmp.eq.s32.totalorder %s16, 3
    %p133 = por %p131, %p132
    %p134 = scmp.ne.s32.totalorder %s123, %s124
    %p135 = scmp.eq.s32.totalorder %s16, 0
    %p136 = por %p134, %p135
    %p137 = scmp.ne.s32.totalorder %s123, %s124
    %p138 = scmp.eq.s32.totalorder %s17, 3
    %p139 = por %p137, %p138
    %p141 = scmp.ne.s32.totalorder %s124, %s140
    %p142 = scmp.eq.s32.totalorder %s17, 0
    %p143 = por %p141, %p142
    %p144 = scmp.le.s32.totalorder 1, %s11
    %p145 = scmp.lt.s32.totalorder %s11, 5
    %p146 = pnand %p144, %p145
    %p147 = pneg %p146
    // Predicated region
    $region9: #{residual_conv_forward.8} parent=5 // pred_check
      _
    $region10: #{residual_conv_forward.8} parent=5 // pred_check_branch
      %149 = sbr.rel (%p146) target = $region12
    $region11: #{residual_conv_forward.8} parent=5 // pred_region
      %s150 = ssub.s32 %s11, 1
      // Predicated region
      $region13: #{residual_conv_forward.8} parent=11 // pred_check
        %p151 = pneg %p58
      $region14: #{residual_conv_forward.8} parent=11 // pred_check_branch
        %153 = sbr.rel (%p151) target = $region16
      $region15: #{residual_conv_forward.8} parent=11 // pred_region
        _
      $region16: #{residual_conv_forward.8} parent=11 // pred_fallthru
        _
    $region12: #{residual_conv_forward.8} parent=5 // pred_fallthru
      _
    %p154 = scmp.lt.s32.totalorder %s11, 4
    // Predicated region
    $region17: #{residual_conv_forward.8} parent=5 // pred_check
      %p155 = pneg %p154
    $region18: #{residual_conv_forward.8} parent=5 // pred_check_branch
      %157 = sbr.rel (%p155) target = $region20
    $region19: #{residual_conv_forward.8} parent=5 // pred_region
      // Predicated region
      $region21: #{residual_conv_forward.8} parent=19 // pred_check
        %p158 = pneg %p31
      $region22: #{residual_conv_forward.8} parent=19 // pred_check_branch
        %160 = sbr.rel (%p158) target = $region24
      $region23: #{residual_conv_forward.8} parent=19 // pred_region
        %s161 = smul.u32 32, %s11
        %p162 = scmp.lt.s32.totalorder %s161, 127
        %s163 = scalar_select %p162, %s161, 127
        %s164 = smul.addr %s163, 4
        %s165 = scalar_lea.vmem %s0, %s164
        %s166 = smul.u32 32, %s11
      $region24: #{residual_conv_forward.8} parent=19 // pred_fallthru
        _
    $region20: #{residual_conv_forward.8} parent=5 // pred_fallthru
      _
    %p167 = scmp.le.s32.totalorder 1, %s11
    %p168 = scmp.lt.s32.totalorder %s11, 5
    %p169 = pnand %p167, %p168
    %p170 = pneg %p169
    // Predicated region
    $region25: #{residual_conv_forward.8} parent=5 // pred_check
      _
    $region26: #{residual_conv_forward.8} parent=5 // pred_check_branch
      %172 = sbr.rel (%p169) target = $region28
    $region27: #{residual_conv_forward.8} parent=5 // pred_region
      %s173 = ssub.s32 %s11, 1
      %s174 = smul.u32 32, %s16
      %p175 = scmp.lt.s32.totalorder %s174, 127
      %s176 = scalar_select %p175, %s174, 127
      %s177 = smul.addr %s176, 4
      %s178 = scalar_lea.vmem %s0, %s177
      %p179 = pneg %p37
      %p180 = pneg %p34
      %p181 = pneg %p58
      %p182 = pneg %p55
      %p183 = pneg %p84
      %p184 = pneg %p81
      %s185 = smul.u32 32, %s16
      %p186 = scmp.lt.s32.totalorder %s185, 127
      %s187 = scalar_select %p186, %s185, 127
      %s188 = smul.addr %s187, 4
      %s189 = scalar_lea.vmem %s2, %s188
      %p190 = pneg %p110
      %p191 = pneg %p107
      %p192 = scmp.lt.s32.totalorder %s16, 3
      %s193 = scalar_select %p192, %s16, 3
      %s194 = scalar_lea.vmem %s3, %s193
      %p195 = pneg %p136
      %p196 = pneg %p133
      %p197 = scmp.lt.s32.totalorder %s16, 3
      %s198 = scalar_select %p197, %s16, 3
      %s199 = scalar_lea.vmem %s4, %s198
      %s200 = smul.u32 32, %s16
      %p201 = scmp.lt.s32.totalorder %s200, 127
      %s202 = scalar_select %p201, %s200, 127
      %s203 = smul.addr %s202, 4
      %s204 = scalar_lea.vmem %s0, %s203
      %s205 = smul.u32 32, %s16
      %s206 = smul.u32 32, %s16
      %p207 = scmp.lt.s32.totalorder %s206, 127
      %s208 = scalar_select %p207, %s206, 127
      %s209 = smul.addr %s208, 4
      %s210 = scalar_lea.vmem %s2, %s209
      %s211 = smul.u32 32, %s16
      %p212 = scmp.lt.s32.totalorder %s16, 3
      %s213 = scalar_select %p212, %s16, 3
      %s214 = scalar_lea.vmem %s3, %s213
      %p215 = scmp.lt.s32.totalorder %s16, 3
      %s216 = scalar_select %p215, %s16, 3
      %s217 = scalar_lea.vmem %s4, %s216
      %v219 = vld [vmem:[%s204] sm:$0xf]
      %v220 = vld [vmem:[%s204 + $0x4] sm:$0xf]
      %v221 = vld [vmem:[%s204 + $0x8] sm:$0xf]
      %v222 = vld [vmem:[%s204 + $0xc] sm:$0xf]
      %v223 = vld [vmem:[%s204 + $0x10] sm:$0xf]
      %v224 = vld [vmem:[%s204 + $0x14] sm:$0xf]
      %v225 = vld [vmem:[%s204 + $0x18] sm:$0xf]
      %v226 = vld [vmem:[%s204 + $0x1c] sm:$0xf]
      %v227 = vld [vmem:[%s204 + $0x20] sm:$0xf]
      %v228 = vld [vmem:[%s204 + $0x24] sm:$0xf]
      %v229 = vld [vmem:[%s204 + $0x28] sm:$0xf]
      %v230 = vld [vmem:[%s204 + $0x2c] sm:$0xf]
      %v231 = vld [vmem:[%s204 + $0x30] sm:$0xf]
      %v232 = vld [vmem:[%s204 + $0x34] sm:$0xf]
      %v233 = vld [vmem:[%s204 + $0x38] sm:$0xf]
      %v234 = vld [vmem:[%s204 + $0x3c] sm:$0xf]
      %v235 = vld [vmem:[%s204 + $0x40] sm:$0xf]
      %v236 = vld [vmem:[%s204 + $0x44] sm:$0xf]
      %v237 = vld [vmem:[%s204 + $0x48] sm:$0xf]
      %v238 = vld [vmem:[%s204 + $0x4c] sm:$0xf]
      %v239 = vld [vmem:[%s204 + $0x50] sm:$0xf]
      %v240 = vld [vmem:[%s204 + $0x54] sm:$0xf]
      %v241 = vld [vmem:[%s204 + $0x58] sm:$0xf]
      %v242 = vld [vmem:[%s204 + $0x5c] sm:$0xf]
      %v243 = vld [vmem:[%s204 + $0x60] sm:$0xf]
      %v244 = vld [vmem:[%s204 + $0x64] sm:$0xf]
      %v245 = vld [vmem:[%s204 + $0x68] sm:$0xf]
      %v246 = vld [vmem:[%s204 + $0x6c] sm:$0xf]
      %v247 = vld [vmem:[%s204 + $0x70] sm:$0xf]
      %v248 = vld [vmem:[%s204 + $0x74] sm:$0xf]
      %v249 = vld [vmem:[%s204 + $0x78] sm:$0xf]
      %v250 = vld [vmem:[%s204 + $0x7c] sm:$0xf]
      %v251 = vld [vmem:[%s1] sm:$0xf]
      %v252 = vld [vmem:[%s1 + $0x4] sm:$0xf]
      %v253 = vld [vmem:[%s1 + $0x8] sm:$0xf]
      %v254 = vld [vmem:[%s1 + $0xc] sm:$0xf]
      %v255 = vld [vmem:[%s1 + $0x10] sm:$0xf]
      %v256 = vld [vmem:[%s1 + $0x14] sm:$0xf]
      %v257 = vld [vmem:[%s1 + $0x18] sm:$0xf]
      %v258 = vld [vmem:[%s1 + $0x1c] sm:$0xf]
      %v259 = vld [vmem:[%s1 + $0x20] sm:$0xf]
      %v260 = vld [vmem:[%s1 + $0x24] sm:$0xf]
      %v261 = vld [vmem:[%s1 + $0x28] sm:$0xf]
      %v262 = vld [vmem:[%s1 + $0x2c] sm:$0xf]
      %v263 = vld [vmem:[%s1 + $0x30] sm:$0xf]
      %v264 = vld [vmem:[%s1 + $0x34] sm:$0x3]
      %v297 = vunpack.c.l.b16 %v219
      %v298 = vunpack.c.l.b16 %v220
      %v299 = vunpack.c.l.b16 %v221
      %v300 = vunpack.c.l.b16 %v222
      %v301 = vunpack.c.l.b16 %v223
      %v302 = vunpack.c.l.b16 %v224
      %v303 = vunpack.c.l.b16 %v225
      %v304 = vunpack.c.l.b16 %v226
      %v305 = vunpack.c.l.b16 %v227
      %v306 = vunpack.c.l.b16 %v228
      %v307 = vunpack.c.l.b16 %v229
      %v308 = vunpack.c.l.b16 %v230
      %v309 = vunpack.c.l.b16 %v231
      %v310 = vunpack.c.l.b16 %v232
      %v311 = vunpack.c.l.b16 %v233
      %v312 = vunpack.c.l.b16 %v234
      %v313 = vunpack.c.l.b16 %v235
      %v314 = vunpack.c.l.b16 %v236
      %v315 = vunpack.c.l.b16 %v237
      %v316 = vunpack.c.l.b16 %v238
      %v317 = vunpack.c.l.b16 %v239
      %v318 = vunpack.c.l.b16 %v240
      %v319 = vunpack.c.l.b16 %v241
      %v320 = vunpack.c.l.b16 %v242
      %v321 = vunpack.c.l.b16 %v243
      %v322 = vunpack.c.l.b16 %v244
      %v323 = vunpack.c.l.b16 %v245
      %v324 = vunpack.c.l.b16 %v246
      %v325 = vunpack.c.l.b16 %v247
      %v326 = vunpack.c.l.b16 %v248
      %v327 = vunpack.c.l.b16 %v249
      %v328 = vunpack.c.l.b16 %v250
      %v329 = vpack.c.b16 %v298, %v297
      %v330 = vpack.c.b16 %v300, %v299
      %v331 = vpack.c.b16 %v302, %v301
      %v332 = vpack.c.b16 %v304, %v303
      %v333 = vpack.c.b16 %v306, %v305
      %v334 = vpack.c.b16 %v308, %v307
      %v335 = vpack.c.b16 %v310, %v309
      %v336 = vpack.c.b16 %v312, %v311
      %v337 = vpack.c.b16 %v314, %v313
      %v338 = vpack.c.b16 %v316, %v315
      %v339 = vpack.c.b16 %v318, %v317
      %v340 = vpack.c.b16 %v320, %v319
      %v341 = vpack.c.b16 %v322, %v321
      %v342 = vpack.c.b16 %v324, %v323
      %v343 = vpack.c.b16 %v326, %v325
      %v344 = vpack.c.b16 %v328, %v327
      %v359 = vunpack.c.l.b16 %v251
      %v360 = vunpack.c.l.b16 %v252
      %v361 = vunpack.c.l.b16 %v253
      %v362 = vunpack.c.l.b16 %v254
      %v363 = vunpack.c.l.b16 %v255
      %v364 = vunpack.c.l.b16 %v256
      %v365 = vunpack.c.l.b16 %v257
      %v366 = vunpack.c.l.b16 %v258
      %v367 = vunpack.c.l.b16 %v259
      %v368 = vunpack.c.l.b16 %v260
      %v369 = vunpack.c.l.b16 %v261
      %v370 = vunpack.c.l.b16 %v262
      %v371 = vunpack.c.l.b16 %v263
      %v372 = vunpack.c.l.b16 %v264
      %v373 = vpack.c.b16 %v360, %v359
      %v374 = vpack.c.b16 %v362, %v361
      %v375 = vpack.c.b16 %v364, %v363
      %v376 = vpack.c.b16 %v366, %v365
      %v377 = vpack.c.b16 %v368, %v367
      %v378 = vpack.c.b16 %v370, %v369
      %v379 = vpack.c.b16 %v372, %v371
      %vm386 = vcmask 883712
      %v388 = vsel %vm386, %v329, 0
      %v391 = vsel %vm386, %v330, 0
      %v394 = vsel %vm386, %v331, 0
      %v397 = vsel %vm386, %v332, 0
      %v400 = vsel %vm386, %v333, 0
      %v403 = vsel %vm386, %v334, 0
      %v406 = vsel %vm386, %v335, 0
      %v409 = vsel %vm386, %v336, 0
      %v412 = vsel %vm386, %v337, 0
      %v415 = vsel %vm386, %v338, 0
      %v418 = vsel %vm386, %v339, 0
      %v421 = vsel %vm386, %v340, 0
      %v424 = vsel %vm386, %v341, 0
      %v427 = vsel %vm386, %v342, 0
      %v430 = vsel %vm386, %v343, 0
      %v433 = vsel %vm386, %v344, 0
      %vm435 = vcmask 1045504
      %v437 = vsel %vm435, %v379, 0
      %439 = vmatpush.bf16.msra.mxu0 0
      %440 = vmatpush.bf16.msra.mxu0 %v437
      %441 = vmatpush.bf16.msra.mxu0 %v378
      %442 = vmatpush.bf16.msra.mxu0 %v377
      %443 = vmatpush.bf16.msra.mxu0 %v376
      %444 = vmatpush.bf16.msra.mxu0 %v375
      %445 = vmatpush.bf16.msra.mxu0 %v374
      %446 = vmatpush.bf16.msra.mxu0 %v373
      %447 = vmatmul.bf16.gmra.mxu0 %v388
      %v448 = vpop.f32.mrf.mxu0
      %v449 = vadd.f32 0.0, %v448
      %v450 = vpop.f32.mrf.mxu0
      %v451 = vadd.f32 0.0, %v450
      %452 = vmatmul.bf16.gmra.mxu0 %v391
      %v453 = vpop.f32.mrf.mxu0
      %v454 = vadd.f32 0.0, %v453
      %v455 = vpop.f32.mrf.mxu0
      %v456 = vadd.f32 0.0, %v455
      %457 = vmatmul.bf16.gmra.mxu0 %v394
      %v458 = vpop.f32.mrf.mxu0
      %v459 = vadd.f32 0.0, %v458
      %v460 = vpop.f32.mrf.mxu0
      %v461 = vadd.f32 0.0, %v460
      %462 = vmatmul.bf16.gmra.mxu0 %v397
      %v463 = vpop.f32.mrf.mxu0
      %v464 = vadd.f32 0.0, %v463
      %v465 = vpop.f32.mrf.mxu0
      %v466 = vadd.f32 0.0, %v465
      %467 = vmatmul.bf16.gmra.mxu0 %v400
      %v468 = vpop.f32.mrf.mxu0
      %v469 = vadd.f32 0.0, %v468
      %v470 = vpop.f32.mrf.mxu0
      %v471 = vadd.f32 0.0, %v470
      %472 = vmatmul.bf16.gmra.mxu0 %v403
      %v473 = vpop.f32.mrf.mxu0
      %v474 = vadd.f32 0.0, %v473
      %v475 = vpop.f32.mrf.mxu0
      %v476 = vadd.f32 0.0, %v475
      %477 = vmatmul.bf16.gmra.mxu0 %v406
      %v478 = vpop.f32.mrf.mxu0
      %v479 = vadd.f32 0.0, %v478
      %v480 = vpop.f32.mrf.mxu0
      %v481 = vadd.f32 0.0, %v480
      %482 = vmatmul.bf16.gmra.mxu0 %v409
      %v483 = vpop.f32.mrf.mxu0
      %v484 = vadd.f32 0.0, %v483
      %v485 = vpop.f32.mrf.mxu0
      %v486 = vadd.f32 0.0, %v485
      %487 = vmatmul.bf16.gmra.mxu0 %v412
      %v488 = vpop.f32.mrf.mxu0
      %v489 = vadd.f32 0.0, %v488
      %v490 = vpop.f32.mrf.mxu0
      %v491 = vadd.f32 0.0, %v490
      %492 = vmatmul.bf16.gmra.mxu0 %v415
      %v493 = vpop.f32.mrf.mxu0
      %v494 = vadd.f32 0.0, %v493
      %v495 = vpop.f32.mrf.mxu0
      %v496 = vadd.f32 0.0, %v495
      %497 = vmatmul.bf16.gmra.mxu0 %v418
      %v498 = vpop.f32.mrf.mxu0
      %v499 = vadd.f32 0.0, %v498
      %v500 = vpop.f32.mrf.mxu0
      %v501 = vadd.f32 0.0, %v500
      %502 = vmatmul.bf16.gmra.mxu0 %v421
      %v503 = vpop.f32.mrf.mxu0
      %v504 = vadd.f32 0.0, %v503
      %v505 = vpop.f32.mrf.mxu0
      %v506 = vadd.f32 0.0, %v505
      %507 = vmatmul.bf16.gmra.mxu0 %v424
      %v508 = vpop.f32.mrf.mxu0
      %v509 = vadd.f32 0.0, %v508
      %v510 = vpop.f32.mrf.mxu0
      %v511 = vadd.f32 0.0, %v510
      %512 = vmatmul.bf16.gmra.mxu0 %v427
      %v513 = vpop.f32.mrf.mxu0
      %v514 = vadd.f32 0.0, %v513
      %v515 = vpop.f32.mrf.mxu0
      %v516 = vadd.f32 0.0, %v515
      %517 = vmatmul.bf16.gmra.mxu0 %v430
      %v518 = vpop.f32.mrf.mxu0
      %v519 = vadd.f32 0.0, %v518
      %v520 = vpop.f32.mrf.mxu0
      %v521 = vadd.f32 0.0, %v520
      %522 = vmatmul.bf16.gmra.mxu0 %v433
      %v523 = vpop.f32.mrf.mxu0
      %v524 = vadd.f32 0.0, %v523
      %v525 = vpop.f32.mrf.mxu0
      %v526 = vadd.f32 0.0, %v525
      %527 = vdwg.mxu0
      %v528 = vpack.c.bf16 %v449, %v449
      %v529 = vpack.c.bf16 %v451, %v451
      %v530 = vpack.c.bf16 %v454, %v454
      %v531 = vpack.c.bf16 %v456, %v456
      %v532 = vpack.c.bf16 %v459, %v459
      %v533 = vpack.c.bf16 %v461, %v461
      %v534 = vpack.c.bf16 %v464, %v464
      %v535 = vpack.c.bf16 %v466, %v466
      %v536 = vpack.c.bf16 %v469, %v469
      %v537 = vpack.c.bf16 %v471, %v471
      %v538 = vpack.c.bf16 %v474, %v474
      %v539 = vpack.c.bf16 %v476, %v476
      %v540 = vpack.c.bf16 %v479, %v479
      %v541 = vpack.c.bf16 %v481, %v481
      %v542 = vpack.c.bf16 %v484, %v484
      %v543 = vpack.c.bf16 %v486, %v486
      %v544 = vpack.c.bf16 %v489, %v489
      %v545 = vpack.c.bf16 %v491, %v491
      %v546 = vpack.c.bf16 %v494, %v494
      %v547 = vpack.c.bf16 %v496, %v496
      %v548 = vpack.c.bf16 %v499, %v499
      %v549 = vpack.c.bf16 %v501, %v501
      %v550 = vpack.c.bf16 %v504, %v504
      %v551 = vpack.c.bf16 %v506, %v506
      %v552 = vpack.c.bf16 %v509, %v509
      %v553 = vpack.c.bf16 %v511, %v511
      %v554 = vpack.c.bf16 %v514, %v514
      %v555 = vpack.c.bf16 %v516, %v516
      %v556 = vpack.c.bf16 %v519, %v519
      %v557 = vpack.c.bf16 %v521, %v521
      %v558 = vpack.c.bf16 %v524, %v524
      %v559 = vpack.c.bf16 %v526, %v526
      %vm560 = vcmask 60416
      %561 = vst.msk [vmem:[%s210] sm:$0xf] %vm560, %v528
      %562 = vst.msk [vmem:[%s210 + $0x4] sm:$0xf] %vm560, %v529
      %563 = vst.msk [vmem:[%s210 + $0x8] sm:$0xf] %vm560, %v530
      %564 = vst.msk [vmem:[%s210 + $0xc] sm:$0xf] %vm560, %v531
      %565 = vst.msk [vmem:[%s210 + $0x10] sm:$0xf] %vm560, %v532
      %566 = vst.msk [vmem:[%s210 + $0x14] sm:$0xf] %vm560, %v533
      %567 = vst.msk [vmem:[%s210 + $0x18] sm:$0xf] %vm560, %v534
      %568 = vst.msk [vmem:[%s210 + $0x1c] sm:$0xf] %vm560, %v535
      %569 = vst.msk [vmem:[%s210 + $0x20] sm:$0xf] %vm560, %v536
      %570 = vst.msk [vmem:[%s210 + $0x24] sm:$0xf] %vm560, %v537
      %571 = vst.msk [vmem:[%s210 + $0x28] sm:$0xf] %vm560, %v538
      %572 = vst.msk [vmem:[%s210 + $0x2c] sm:$0xf] %vm560, %v539
      %573 = vst.msk [vmem:[%s210 + $0x30] sm:$0xf] %vm560, %v540
      %574 = vst.msk [vmem:[%s210 + $0x34] sm:$0xf] %vm560, %v541
      %575 = vst.msk [vmem:[%s210 + $0x38] sm:$0xf] %vm560, %v542
      %576 = vst.msk [vmem:[%s210 + $0x3c] sm:$0xf] %vm560, %v543
      %577 = vst.msk [vmem:[%s210 + $0x40] sm:$0xf] %vm560, %v544
      %578 = vst.msk [vmem:[%s210 + $0x44] sm:$0xf] %vm560, %v545
      %579 = vst.msk [vmem:[%s210 + $0x48] sm:$0xf] %vm560, %v546
      %580 = vst.msk [vmem:[%s210 + $0x4c] sm:$0xf] %vm560, %v547
      %581 = vst.msk [vmem:[%s210 + $0x50] sm:$0xf] %vm560, %v548
      %582 = vst.msk [vmem:[%s210 + $0x54] sm:$0xf] %vm560, %v549
      %583 = vst.msk [vmem:[%s210 + $0x58] sm:$0xf] %vm560, %v550
      %584 = vst.msk [vmem:[%s210 + $0x5c] sm:$0xf] %vm560, %v551
      %585 = vst.msk [vmem:[%s210 + $0x60] sm:$0xf] %vm560, %v552
      %586 = vst.msk [vmem:[%s210 + $0x64] sm:$0xf] %vm560, %v553
      %587 = vst.msk [vmem:[%s210 + $0x68] sm:$0xf] %vm560, %v554
      %588 = vst.msk [vmem:[%s210 + $0x6c] sm:$0xf] %vm560, %v555
      %589 = vst.msk [vmem:[%s210 + $0x70] sm:$0xf] %vm560, %v556
      %590 = vst.msk [vmem:[%s210 + $0x74] sm:$0xf] %vm560, %v557
      %591 = vst.msk [vmem:[%s210 + $0x78] sm:$0xf] %vm560, %v558
      %592 = vst.msk [vmem:[%s210 + $0x7c] sm:$0xf] %vm560, %v559
      %vm593 = vcmask 64512
      %v594 = vsel %vm593, %v449, 0.0
      %v595 = vsel %vm593, %v451, 0.0
      %v596 = vadd.f32 %v594, %v595
      %v597 = vsel %vm593, %v454, 0.0
      %v598 = vadd.f32 %v596, %v597
      %v599 = vsel %vm593, %v456, 0.0
      %v600 = vadd.f32 %v598, %v599
      %v601 = vsel %vm593, %v459, 0.0
      %v602 = vadd.f32 %v600, %v601
      %v603 = vsel %vm593, %v461, 0.0
      %v604 = vadd.f32 %v602, %v603
      %v605 = vsel %vm593, %v464, 0.0
      %v606 = vadd.f32 %v604, %v605
      %v607 = vsel %vm593, %v466, 0.0
      %v608 = vadd.f32 %v606, %v607
      %v609 = vsel %vm593, %v469, 0.0
      %v610 = vadd.f32 %v608, %v609
      %v611 = vsel %vm593, %v471, 0.0
      %v612 = vadd.f32 %v610, %v611
      %v613 = vsel %vm593, %v474, 0.0
      %v614 = vadd.f32 %v612, %v613
      %v615 = vsel %vm593, %v476, 0.0
      %v616 = vadd.f32 %v614, %v615
      %v617 = vsel %vm593, %v479, 0.0
      %v618 = vadd.f32 %v616, %v617
      %v619 = vsel %vm593, %v481, 0.0
      %v620 = vadd.f32 %v618, %v619
      %v621 = vsel %vm593, %v484, 0.0
      %v622 = vadd.f32 %v620, %v621
      %v623 = vsel %vm593, %v486, 0.0
      %v624 = vadd.f32 %v622, %v623
      %v625 = vsel %vm593, %v489, 0.0
      %v626 = vadd.f32 %v624, %v625
      %v627 = vsel %vm593, %v491, 0.0
      %v628 = vadd.f32 %v626, %v627
      %v629 = vsel %vm593, %v494, 0.0
      %v630 = vadd.f32 %v628, %v629
      %v631 = vsel %vm593, %v496, 0.0
      %v632 = vadd.f32 %v630, %v631
      %v633 = vsel %vm593, %v499, 0.0
      %v634 = vadd.f32 %v632, %v633
      %v635 = vsel %vm593, %v501, 0.0
      %v636 = vadd.f32 %v634, %v635
      %v637 = vsel %vm593, %v504, 0.0
      %v638 = vadd.f32 %v636, %v637
      %v639 = vsel %vm593, %v506, 0.0
      %v640 = vadd.f32 %v638, %v639
      %v641 = vsel %vm593, %v509, 0.0
      %v642 = vadd.f32 %v640, %v641
      %v643 = vsel %vm593, %v511, 0.0
      %v644 = vadd.f32 %v642, %v643
      %v645 = vsel %vm593, %v514, 0.0
      %v646 = vadd.f32 %v644, %v645
      %v647 = vsel %vm593, %v516, 0.0
      %v648 = vadd.f32 %v646, %v647
      %v649 = vsel %vm593, %v519, 0.0
      %v650 = vadd.f32 %v648, %v649
      %v651 = vsel %vm593, %v521, 0.0
      %v652 = vadd.f32 %v650, %v651
      %v653 = vsel %vm593, %v524, 0.0
      %v654 = vadd.f32 %v652, %v653
      %v655 = vsel %vm593, %v526, 0.0
      %v656 = vadd.f32 %v654, %v655
      %v657 = vrot.slane %v656, 4
      %v658 = vadd.f32 %v656, %v657
      %v659 = vrot.slane %v658, 2
      %v660 = vadd.f32 %v658, %v659
      %v661 = vrot.slane %v660, 1
      %v662 = vadd.f32 %v660, %v661
      %vm663 = vcmask 57344
      %664 = vst.msk [vmem:[%s214] sm:$0x1] %vm663, %v662
      %v665 = vmul.f32 %v449, %v449
      %v666 = vmul.f32 %v451, %v451
      %v667 = vmul.f32 %v454, %v454
      %v668 = vmul.f32 %v456, %v456
      %v669 = vmul.f32 %v459, %v459
      %v670 = vmul.f32 %v461, %v461
      %v671 = vmul.f32 %v464, %v464
      %v672 = vmul.f32 %v466, %v466
      %v673 = vmul.f32 %v469, %v469
      %v674 = vmul.f32 %v471, %v471
      %v675 = vmul.f32 %v474, %v474
      %v676 = vmul.f32 %v476, %v476
      %v677 = vmul.f32 %v479, %v479
      %v678 = vmul.f32 %v481, %v481
      %v679 = vmul.f32 %v484, %v484
      %v680 = vmul.f32 %v486, %v486
      %v681 = vmul.f32 %v489, %v489
      %v682 = vmul.f32 %v491, %v491
      %v683 = vmul.f32 %v494, %v494
      %v684 = vmul.f32 %v496, %v496
      %v685 = vmul.f32 %v499, %v499
      %v686 = vmul.f32 %v501, %v501
      %v687 = vmul.f32 %v504, %v504
      %v688 = vmul.f32 %v506, %v506
      %v689 = vmul.f32 %v509, %v509
      %v690 = vmul.f32 %v511, %v511
      %v691 = vmul.f32 %v514, %v514
      %v692 = vmul.f32 %v516, %v516
      %v693 = vmul.f32 %v519, %v519
      %v694 = vmul.f32 %v521, %v521
      %v695 = vmul.f32 %v524, %v524
      %v696 = vmul.f32 %v526, %v526
      %v697 = vsel %vm593, %v665, 0.0
      %v698 = vsel %vm593, %v666, 0.0
      %v699 = vadd.f32 %v697, %v698
      %v700 = vsel %vm593, %v667, 0.0
      %v701 = vadd.f32 %v699, %v700
      %v702 = vsel %vm593, %v668, 0.0
      %v703 = vadd.f32 %v701, %v702
      %v704 = vsel %vm593, %v669, 0.0
      %v705 = vadd.f32 %v703, %v704
      %v706 = vsel %vm593, %v670, 0.0
      %v707 = vadd.f32 %v705, %v706
      %v708 = vsel %vm593, %v671, 0.0
      %v709 = vadd.f32 %v707, %v708
      %v710 = vsel %vm593, %v672, 0.0
      %v711 = vadd.f32 %v709, %v710
      %v712 = vsel %vm593, %v673, 0.0
      %v713 = vadd.f32 %v711, %v712
      %v714 = vsel %vm593, %v674, 0.0
      %v715 = vadd.f32 %v713, %v714
      %v716 = vsel %vm593, %v675, 0.0
      %v717 = vadd.f32 %v715, %v716
      %v718 = vsel %vm593, %v676, 0.0
      %v719 = vadd.f32 %v717, %v718
      %v720 = vsel %vm593, %v677, 0.0
      %v721 = vadd.f32 %v719, %v720
      %v722 = vsel %vm593, %v678, 0.0
      %v723 = vadd.f32 %v721, %v722
      %v724 = vsel %vm593, %v679, 0.0
      %v725 = vadd.f32 %v723, %v724
      %v726 = vsel %vm593, %v680, 0.0
      %v727 = vadd.f32 %v725, %v726
      %v728 = vsel %vm593, %v681, 0.0
      %v729 = vadd.f32 %v727, %v728
      %v730 = vsel %vm593, %v682, 0.0
      %v731 = vadd.f32 %v729, %v730
      %v732 = vsel %vm593, %v683, 0.0
      %v733 = vadd.f32 %v731, %v732
      %v734 = vsel %vm593, %v684, 0.0
      %v735 = vadd.f32 %v733, %v734
      %v736 = vsel %vm593, %v685, 0.0
      %v737 = vadd.f32 %v735, %v736
      %v738 = vsel %vm593, %v686, 0.0
      %v739 = vadd.f32 %v737, %v738
      %v740 = vsel %vm593, %v687, 0.0
      %v741 = vadd.f32 %v739, %v740
      %v742 = vsel %vm593, %v688, 0.0
      %v743 = vadd.f32 %v741, %v742
      %v744 = vsel %vm593, %v689, 0.0
      %v745 = vadd.f32 %v743, %v744
      %v746 = vsel %vm593, %v690, 0.0
      %v747 = vadd.f32 %v745, %v746
      %v748 = vsel %vm593, %v691, 0.0
      %v749 = vadd.f32 %v747, %v748
      %v750 = vsel %vm593, %v692, 0.0
      %v751 = vadd.f32 %v749, %v750
      %v752 = vsel %vm593, %v693, 0.0
      %v753 = vadd.f32 %v751, %v752
      %v754 = vsel %vm593, %v694, 0.0
      %v755 = vadd.f32 %v753, %v754
      %v756 = vsel %vm593, %v695, 0.0
      %v757 = vadd.f32 %v755, %v756
      %v758 = vsel %vm593, %v696, 0.0
      %v759 = vadd.f32 %v757, %v758
      %v760 = vrot.slane %v759, 4
      %v761 = vadd.f32 %v759, %v760
      %v762 = vrot.slane %v761, 2
      %v763 = vadd.f32 %v761, %v762
      %v764 = vrot.slane %v763, 1
      %v765 = vadd.f32 %v763, %v764
      %766 = vst.msk [vmem:[%s217] sm:$0x1] %vm663, %v765
      %s767 = smul.u32 32, %s16
      %p768 = scmp.lt.s32.totalorder %s767, 127
      %s769 = scalar_select %p768, %s767, 127
      %s770 = smul.addr %s769, 4
      %s771 = scalar_lea.vmem %s2, %s770
      %p772 = scmp.lt.s32.totalorder %s16, 3
      %s773 = scalar_select %p772, %s16, 3
      %s774 = scalar_lea.vmem %s3, %s773
      %p775 = scmp.lt.s32.totalorder %s16, 3
      %s776 = scalar_select %p775, %s16, 3
      %s777 = scalar_lea.vmem %s4, %s776
      // Predicated region
      $region29: #{residual_conv_forward.8} parent=27 // pred_check
        %p778 = pneg %p81
      $region30: #{residual_conv_forward.8} parent=27 // pred_check_branch
        %780 = sbr.rel (%p778) target = $region32
      $region31: #{residual_conv_forward.8} parent=27 // pred_region
        %s781 = smul.u32 32, %s16
      $region32: #{residual_conv_forward.8} parent=27 // pred_fallthru
        _
      // Predicated region
      $region33: #{residual_conv_forward.8} parent=27 // pred_check
        %p782 = pneg %p107
      $region34: #{residual_conv_forward.8} parent=27 // pred_check_branch
        %784 = sbr.rel (%p782) target = $region36
      $region35: #{residual_conv_forward.8} parent=27 // pred_region
        _
      $region36: #{residual_conv_forward.8} parent=27 // pred_fallthru
        _
      // Predicated region
      $region37: #{residual_conv_forward.8} parent=27 // pred_check
        %p785 = pneg %p133
      $region38: #{residual_conv_forward.8} parent=27 // pred_check_branch
        %787 = sbr.rel (%p785) target = $region40
      $region39: #{residual_conv_forward.8} parent=27 // pred_region
        _
      $region40: #{residual_conv_forward.8} parent=27 // pred_fallthru
        _
    $region28: #{residual_conv_forward.8} parent=5 // pred_fallthru
      _
    %p788 = scmp.le.s32.totalorder 2, %s11
    // Predicated region
    $region41: #{residual_conv_forward.8} parent=5 // pred_check
      %p789 = pneg %p788
    $region42: #{residual_conv_forward.8} parent=5 // pred_check_branch
      %791 = sbr.rel (%p789) target = $region44
    $region43: #{residual_conv_forward.8} parent=5 // pred_region
      %s792 = ssub.s32 %s11, 2
      // Predicated region
      $region45: #{residual_conv_forward.8} parent=43 // pred_check
        %p793 = pneg %p87
      $region46: #{residual_conv_forward.8} parent=43 // pred_check_branch
        %795 = sbr.rel (%p793) target = $region48
      $region47: #{residual_conv_forward.8} parent=43 // pred_region
        %s796 = smul.u32 32, %s17
        %p797 = scmp.lt.s32.totalorder %s796, 127
        %s798 = scalar_select %p797, %s796, 127
        %s799 = smul.addr %s798, 4
        %s800 = scalar_lea.vmem %s2, %s799
      $region48: #{residual_conv_forward.8} parent=43 // pred_fallthru
        _
      // Predicated region
      $region49: #{residual_conv_forward.8} parent=43 // pred_check
        %p801 = pneg %p113
      $region50: #{residual_conv_forward.8} parent=43 // pred_check_branch
        %803 = sbr.rel (%p801) target = $region52
      $region51: #{residual_conv_forward.8} parent=43 // pred_region
        %p804 = scmp.lt.s32.totalorder %s17, 3
        %s805 = scalar_select %p804, %s17, 3
        %s806 = scalar_lea.vmem %s3, %s805
      $region52: #{residual_conv_forward.8} parent=43 // pred_fallthru
        _
      // Predicated region
      $region53: #{residual_conv_forward.8} parent=43 // pred_check
        %p807 = pneg %p139
      $region54: #{residual_conv_forward.8} parent=43 // pred_check_branch
        %809 = sbr.rel (%p807) target = $region56
      $region55: #{residual_conv_forward.8} parent=43 // pred_region
        %p810 = scmp.lt.s32.totalorder %s17, 3
        %s811 = scalar_select %p810, %s17, 3
        %s812 = scalar_lea.vmem %s4, %s811
      $region56: #{residual_conv_forward.8} parent=43 // pred_fallthru
        _
    $region44: #{residual_conv_forward.8} parent=5 // pred_fallthru
      _
  $region6: #{residual_conv_forward.8} parent=0 // loop_footer
    %s15 = sadd.s32 1, %s11
  $region7: #{residual_conv_forward.8} parent=0 // loop_footer_branch
    %10 = sbr.rel target = $region3
  $region8: #{residual_conv_forward.8} parent=0 // loop_exit
    _

// kernel: residual_conv_forward.9
$region0: #{residual_conv_forward.9}
  #allocation0 [shape = 'u32[]', space=smem, size = 0x4, offset = 0x4, fixed_abs, tag = 'smem constant byte address 0x4 - core index']
  #allocation1 [shape = 'u32[72,128]{1,0:T(1,128)}', space=vmem, size = 0x9000, scoped, tag = 'internal scratch']
  %s0 = inlined_call_operand.vmem [shape: bf16[64,128], index: 0, kind: input, shape index: {}]
  %s1 = inlined_call_operand.vmem [shape: f32[1,128], index: 1, kind: input, shape index: {}]
  %s2 = inlined_call_operand.vmem [shape: f32[1,128], index: 2, kind: input, shape index: {}]
  %s3 = inlined_call_operand.vmem [shape: bf16[64,128], index: 3, kind: output, shape index: {}]
  %s4 = sld [smem:[#allocation0]]
  $region22: #{residual_conv_forward.9} parent=0
    _
  %s6 = ssub.s32 1, %s4
  %s7 = scalar_select 0, %s6, %s4
  // Predicated region
  $region2: #{residual_conv_forward.9} parent=0 // pred_check
    _
  $region3: #{residual_conv_forward.9} parent=0 // pred_check_branch
    %9 = sbr.rel (0) target = $region5
  $region4: #{residual_conv_forward.9} parent=0 // pred_region
    _
  $region5: #{residual_conv_forward.9} parent=0 // pred_fallthru
    _
  // Predicated region
  $region6: #{residual_conv_forward.9} parent=0 // pred_check
    _
  $region7: #{residual_conv_forward.9} parent=0 // pred_check_branch
    %11 = sbr.rel (0) target = $region9
  $region8: #{residual_conv_forward.9} parent=0 // pred_region
    _
  $region9: #{residual_conv_forward.9} parent=0 // pred_fallthru
    _
  // Predicated region
  $region10: #{residual_conv_forward.9} parent=0 // pred_check
    _
  $region11: #{residual_conv_forward.9} parent=0 // pred_check_branch
    %13 = sbr.rel (0) target = $region13
  $region12: #{residual_conv_forward.9} parent=0 // pred_region
    _
  $region13: #{residual_conv_forward.9} parent=0 // pred_fallthru
    _
  %v14 = vld [vmem:[%s0] sm:$0xf]
  %v15 = vld [vmem:[%s0 + $0x4] sm:$0xf]
  %v16 = vld [vmem:[%s0 + $0x8] sm:$0xf]
  %v17 = vld [vmem:[%s0 + $0xc] sm:$0xf]
  %v18 = vld [vmem:[%s0 + $0x10] sm:$0xf]
  %v19 = vld [vmem:[%s0 + $0x14] sm:$0xf]
  %v20 = vld [vmem:[%s0 + $0x18] sm:$0xf]
  %v21 = vld [vmem:[%s0 + $0x1c] sm:$0xf]
  %v22 = vunpack.c.l.bf16 %v14
  %v23 = vunpack.c.l.bf16 %v15
  %v24 = vunpack.c.l.bf16 %v16
  %v25 = vunpack.c.l.bf16 %v17
  %v26 = vunpack.c.l.bf16 %v18
  %v27 = vunpack.c.l.bf16 %v19
  %v28 = vunpack.c.l.bf16 %v20
  %v29 = vunpack.c.l.bf16 %v21
  %v30 = vld [vmem:[%s1] sm:$0x1]
  %v32 = vperm.slane %v30, 0
  %v34 = vmul.f32 %v22, %v32
  %v35 = vmul.f32 %v23, %v32
  %v36 = vmul.f32 %v24, %v32
  %v37 = vmul.f32 %v25, %v32
  %v38 = vmul.f32 %v26, %v32
  %v39 = vmul.f32 %v27, %v32
  %v40 = vmul.f32 %v28, %v32
  %v41 = vmul.f32 %v29, %v32
  %v42 = vld [vmem:[%s2] sm:$0x1]
  %v44 = vperm.slane %v42, 0
  %v46 = vadd.f32 %v34, %v44
  %v47 = vadd.f32 %v35, %v44
  %v48 = vadd.f32 %v36, %v44
  %v49 = vadd.f32 %v37, %v44
  %v50 = vadd.f32 %v38, %v44
  %v51 = vadd.f32 %v39, %v44
  %v52 = vadd.f32 %v40, %v44
  %v53 = vadd.f32 %v41, %v44
  %v54 = vmax.f32 %v46, 0.0
  %v55 = vmax.f32 %v47, 0.0
  %v56 = vmax.f32 %v48, 0.0
  %v57 = vmax.f32 %v49, 0.0
  %v58 = vmax.f32 %v50, 0.0
  %v59 = vmax.f32 %v51, 0.0
  %v60 = vmax.f32 %v52, 0.0
  %v61 = vmax.f32 %v53, 0.0
  %v62 = vpack.c.bf16 %v54, %v54
  %v63 = vpack.c.bf16 %v55, %v55
  %v64 = vpack.c.bf16 %v56, %v56
  %v65 = vpack.c.bf16 %v57, %v57
  %v66 = vpack.c.bf16 %v58, %v58
  %v67 = vpack.c.bf16 %v59, %v59
  %v68 = vpack.c.bf16 %v60, %v60
  %v69 = vpack.c.bf16 %v61, %v61
  %70 = vst [vmem:[%s3] sm:$0xf] %v62
  %71 = vst [vmem:[%s3 + $0x4] sm:$0xf] %v63
  %72 = vst [vmem:[%s3 + $0x8] sm:$0xf] %v64
  %73 = vst [vmem:[%s3 + $0xc] sm:$0xf] %v65
  %74 = vst [vmem:[%s3 + $0x10] sm:$0xf] %v66
  %75 = vst [vmem:[%s3 + $0x14] sm:$0xf] %v67
  %76 = vst [vmem:[%s3 + $0x18] sm:$0xf] %v68
  %77 = vst [vmem:[%s3 + $0x1c] sm:$0xf] %v69
  // Predicated region
  $region14: #{residual_conv_forward.9} parent=0 // pred_check
    _
  $region15: #{residual_conv_forward.9} parent=0 // pred_check_branch
    %79 = sbr.rel (0) target = $region17
  $region16: #{residual_conv_forward.9} parent=0 // pred_region
    _
  $region17: #{residual_conv_forward.9} parent=0 // pred_fallthru
    _
  // Predicated region
  $region18: #{residual_conv_forward.9} parent=0 // pred_check
    _
  $region19: #{residual_conv_forward.9} parent=0 // pred_check_branch
    %81 = sbr.rel (0) target = $region21
  $region20: #{residual_conv_forward.9} parent=0 // pred_region
    _
  $region21: #{residual_conv_forward.9} parent=0 // pred_fallthru
    _

// kernel: residual_conv_forward.11
$region0: #{residual_conv_forward.11}
  #allocation0 [shape = 'u32[]', space=smem, size = 0x4, offset = 0x4, fixed_abs, tag = 'smem constant byte address 0x4 - core index']
  #allocation1 [shape = 'u32[72,128]{1,0:T(1,128)}', space=vmem, size = 0x9000, scoped, tag = 'internal scratch']
  %s0 = inlined_call_operand.vmem [shape: bf16[1024,216], index: 0, kind: input, shape index: {}]
  %s1 = inlined_call_operand.vmem [shape: bf16[216,8], index: 1, kind: input, shape index: {}]
  %s2 = inlined_call_operand.vmem [shape: f32[1,8], index: 2, kind: input, shape index: {}]
  %s3 = inlined_call_operand.vmem [shape: bf16[1024,8], index: 3, kind: input, shape index: {}]
  %s4 = inlined_call_operand.vmem [shape: f32[1,8], index: 4, kind: input, shape index: {}]
  %s5 = inlined_call_operand.vmem [shape: f32[1,8], index: 5, kind: input, shape index: {}]
  %s6 = inlined_call_operand.vmem [shape: f32[1024,8], index: 6, kind: output, shape index: {}]
  %s7 = sld [smem:[#allocation0]]
  $region57: #{residual_conv_forward.11} parent=0
    _
  %s9 = ssub.s32 1, %s7
  %s10 = scalar_select 0, %s9, %s7
  loop: start=0, step=1, limit=6
  $region2: #{residual_conv_forward.11} parent=0 // loop_pre_header
    _
  $region3: #{residual_conv_forward.11} parent=0 // loop_header
    %s12 = sphi 0, %s16
    %p13 = scmp.ge.s32.totalorder %s12, 6
    %s22 = sphi 0, %s24
    %s25 = sphi 0, %s22
    %s26 = sphi 0, %s25
    %s42 = sphi 0, %s26
    %s46 = sphi 0, %s46
    %s48 = sphi 0, %s46
    %s49 = sphi 0, %s48
    %s63 = sphi 0, %s49
    %s67 = sphi 0, %s67
    %s69 = sphi 0, %s67
    %s70 = sphi 0, %s69
    %s84 = sphi 0, %s70
    %s90 = sphi 0, %s92
    %s93 = sphi 0, %s90
    %s94 = sphi 0, %s93
    %s110 = sphi 0, %s94
    %s114 = sphi 0, %s114
    %s116 = sphi 0, %s114
    %s117 = sphi 0, %s116
    %s131 = sphi 0, %s117
    %s135 = sphi 0, %s135
    %s137 = sphi 0, %s135
    %s138 = sphi 0, %s137
    %s152 = sphi 0, %s138
    %s158 = sphi 0, %s160
    %s161 = sphi 0, %s158
    %s162 = sphi 0, %s161
    %s178 = sphi 0, %s162
  $region4: #{residual_conv_forward.11} parent=0 // loop_header_branch
    %15 = sbr.rel (%p13) target = $region8
  $region5: #{residual_conv_forward.11} parent=0 // loop_body
    %s17 = ssub.s32 %s12, 1
    %s18 = ssub.s32 %s12, 2
    %s19 = sadd.s32 %s12, 1
    %s20 = ssub.s32 %s12, %s19
    %p21 = scmp.eq.s32.totalorder %s20, 0
    %s23 = sadd.s32 %s22, 1
    %s24 = scalar_select %p21, %s22, %s23
    %p27 = pneg %p21
    %p28 = scmp.eq.s32.totalorder %s12, 3
    %p29 = por %p27, %p28
    %p30 = scmp.ne.s32.totalorder %s22, %s25
    %p31 = scmp.eq.s32.totalorder %s12, 0
    %p32 = por %p30, %p31
    %p33 = scmp.ne.s32.totalorder %s22, %s25
    %p34 = scmp.eq.s32.totalorder %s17, 3
    %p35 = por %p33, %p34
    %p36 = scmp.ne.s32.totalorder %s25, %s26
    %p37 = scmp.eq.s32.totalorder %s17, 0
    %p38 = por %p36, %p37
    %p39 = scmp.ne.s32.totalorder %s25, %s26
    %p40 = scmp.eq.s32.totalorder %s18, 3
    %p41 = por %p39, %p40
    %p43 = scmp.ne.s32.totalorder %s26, %s42
    %p44 = scmp.eq.s32.totalorder %s18, 0
    %p45 = por %p43, %p44
    %s47 = sadd.s32 %s46, 1
    %p50 = scmp.eq.s32.totalorder %s12, 3
    %p51 = scmp.ne.s32.totalorder %s46, %s48
    %p52 = scmp.eq.s32.totalorder %s12, 0
    %p53 = por %p51, %p52
    %p54 = scmp.ne.s32.totalorder %s46, %s48
    %p55 = scmp.eq.s32.totalorder %s17, 3
    %p56 = por %p54, %p55
    %p57 = scmp.ne.s32.totalorder %s48, %s49
    %p58 = scmp.eq.s32.totalorder %s17, 0
    %p59 = por %p57, %p58
    %p60 = scmp.ne.s32.totalorder %s48, %s49
    %p61 = scmp.eq.s32.totalorder %s18, 3
    %p62 = por %p60, %p61
    %p64 = scmp.ne.s32.totalorder %s49, %s63
    %p65 = scmp.eq.s32.totalorder %s18, 0
    %p66 = por %p64, %p65
    %s68 = sadd.s32 %s67, 1
    %p71 = scmp.eq.s32.totalorder %s12, 3
    %p72 = scmp.ne.s32.totalorder %s67, %s69
    %p73 = scmp.eq.s32.totalorder %s12, 0
    %p74 = por %p72, %p73
    %p75 = scmp.ne.s32.totalorder %s67, %s69
    %p76 = scmp.eq.s32.totalorder %s17, 3
    %p77 = por %p75, %p76
    %p78 = scmp.ne.s32.totalorder %s69, %s70
    %p79 = scmp.eq.s32.totalorder %s17, 0
    %p80 = por %p78, %p79
    %p81 = scmp.ne.s32.totalorder %s69, %s70
    %p82 = scmp.eq.s32.totalorder %s18, 3
    %p83 = por %p81, %p82
    %p85 = scmp.ne.s32.totalorder %s70, %s84
    %p86 = scmp.eq.s32.totalorder %s18, 0
    %p87 = por %p85, %p86
    %s88 = ssub.s32 %s12, %s19
    %p89 = scmp.eq.s32.totalorder %s88, 0
    %s91 = sadd.s32 %s90, 1
    %s92 = scalar_select %p89, %s90, %s91
    %p95 = pneg %p89
    %p96 = scmp.eq.s32.totalorder %s12, 3
    %p97 = por %p95, %p96
    %p98 = scmp.ne.s32.totalorder %s90, %s93
    %p99 = scmp.eq.s32.totalorder %s12, 0
    %p100 = por %p98, %p99
    %p101 = scmp.ne.s32.totalorder %s90, %s93
    %p102 = scmp.eq.s32.totalorder %s17, 3
    %p103 = por %p101, %p102
    %p104 = scmp.ne.s32.totalorder %s93, %s94
    %p105 = scmp.eq.s32.totalorder %s17, 0
    %p106 = por %p104, %p105
    %p107 = scmp.ne.s32.totalorder %s93, %s94
    %p108 = scmp.eq.s32.totalorder %s18, 3
    %p109 = por %p107, %p108
    %p111 = scmp.ne.s32.totalorder %s94, %s110
    %p112 = scmp.eq.s32.totalorder %s18, 0
    %p113 = por %p111, %p112
    %s115 = sadd.s32 %s114, 1
    %p118 = scmp.eq.s32.totalorder %s12, 3
    %p119 = scmp.ne.s32.totalorder %s114, %s116
    %p120 = scmp.eq.s32.totalorder %s12, 0
    %p121 = por %p119, %p120
    %p122 = scmp.ne.s32.totalorder %s114, %s116
    %p123 = scmp.eq.s32.totalorder %s17, 3
    %p124 = por %p122, %p123
    %p125 = scmp.ne.s32.totalorder %s116, %s117
    %p126 = scmp.eq.s32.totalorder %s17, 0
    %p127 = por %p125, %p126
    %p128 = scmp.ne.s32.totalorder %s116, %s117
    %p129 = scmp.eq.s32.totalorder %s18, 3
    %p130 = por %p128, %p129
    %p132 = scmp.ne.s32.totalorder %s117, %s131
    %p133 = scmp.eq.s32.totalorder %s18, 0
    %p134 = por %p132, %p133
    %s136 = sadd.s32 %s135, 1
    %p139 = scmp.eq.s32.totalorder %s12, 3
    %p140 = scmp.ne.s32.totalorder %s135, %s137
    %p141 = scmp.eq.s32.totalorder %s12, 0
    %p142 = por %p140, %p141
    %p143 = scmp.ne.s32.totalorder %s135, %s137
    %p144 = scmp.eq.s32.totalorder %s17, 3
    %p145 = por %p143, %p144
    %p146 = scmp.ne.s32.totalorder %s137, %s138
    %p147 = scmp.eq.s32.totalorder %s17, 0
    %p148 = por %p146, %p147
    %p149 = scmp.ne.s32.totalorder %s137, %s138
    %p150 = scmp.eq.s32.totalorder %s18, 3
    %p151 = por %p149, %p150
    %p153 = scmp.ne.s32.totalorder %s138, %s152
    %p154 = scmp.eq.s32.totalorder %s18, 0
    %p155 = por %p153, %p154
    %s156 = ssub.s32 %s12, %s19
    %p157 = scmp.eq.s32.totalorder %s156, 0
    %s159 = sadd.s32 %s158, 1
    %s160 = scalar_select %p157, %s158, %s159
    %p163 = pneg %p157
    %p164 = scmp.eq.s32.totalorder %s12, 3
    %p165 = por %p163, %p164
    %p166 = scmp.ne.s32.totalorder %s158, %s161
    %p167 = scmp.eq.s32.totalorder %s12, 0
    %p168 = por %p166, %p167
    %p169 = scmp.ne.s32.totalorder %s158, %s161
    %p170 = scmp.eq.s32.totalorder %s17, 3
    %p171 = por %p169, %p170
    %p172 = scmp.ne.s32.totalorder %s161, %s162
    %p173 = scmp.eq.s32.totalorder %s17, 0
    %p174 = por %p172, %p173
    %p175 = scmp.ne.s32.totalorder %s161, %s162
    %p176 = scmp.eq.s32.totalorder %s18, 3
    %p177 = por %p175, %p176
    %p179 = scmp.ne.s32.totalorder %s162, %s178
    %p180 = scmp.eq.s32.totalorder %s18, 0
    %p181 = por %p179, %p180
    %p182 = scmp.le.s32.totalorder 1, %s12
    %p183 = scmp.lt.s32.totalorder %s12, 5
    %p184 = pnand %p182, %p183
    %p185 = pneg %p184
    // Predicated region
    $region9: #{residual_conv_forward.11} parent=5 // pred_check
      _
    $region10: #{residual_conv_forward.11} parent=5 // pred_check_branch
      %187 = sbr.rel (%p184) target = $region12
    $region11: #{residual_conv_forward.11} parent=5 // pred_region
      %s188 = ssub.s32 %s12, 1
      // Predicated region
      $region13: #{residual_conv_forward.11} parent=11 // pred_check
        %p189 = pneg %p59
      $region14: #{residual_conv_forward.11} parent=11 // pred_check_branch
        %191 = sbr.rel (%p189) target = $region16
      $region15: #{residual_conv_forward.11} parent=11 // pred_region
        _
      $region16: #{residual_conv_forward.11} parent=11 // pred_fallthru
        _
      // Predicated region
      $region17: #{residual_conv_forward.11} parent=11 // pred_check
        %p192 = pneg %p80
      $region18: #{residual_conv_forward.11} parent=11 // pred_check_branch
        %194 = sbr.rel (%p192) target = $region20
      $region19: #{residual_conv_forward.11} parent=11 // pred_region
        _
      $region20: #{residual_conv_forward.11} parent=11 // pred_fallthru
        _
      // Predicated region
      $region21: #{residual_conv_forward.11} parent=11 // pred_check
        %p195 = pneg %p127
      $region22: #{residual_conv_forward.11} parent=11 // pred_check_branch
        %197 = sbr.rel (%p195) target = $region24
      $region23: #{residual_conv_forward.11} parent=11 // pred_region
        _
      $region24: #{residual_conv_forward.11} parent=11 // pred_fallthru
        _
      // Predicated region
      $region25: #{residual_conv_forward.11} parent=11 // pred_check
        %p198 = pneg %p148
      $region26: #{residual_conv_forward.11} parent=11 // pred_check_branch
        %200 = sbr.rel (%p198) target = $region28
      $region27: #{residual_conv_forward.11} parent=11 // pred_region
        _
      $region28: #{residual_conv_forward.11} parent=11 // pred_fallthru
        _
    $region12: #{residual_conv_forward.11} parent=5 // pred_fallthru
      _
    %p201 = scmp.lt.s32.totalorder %s12, 4
    // Predicated region
    $region29: #{residual_conv_forward.11} parent=5 // pred_check
      %p202 = pneg %p201
    $region30: #{residual_conv_forward.11} parent=5 // pred_check_branch
      %204 = sbr.rel (%p202) target = $region32
    $region31: #{residual_conv_forward.11} parent=5 // pred_region
      // Predicated region
      $region33: #{residual_conv_forward.11} parent=31 // pred_check
        %p205 = pneg %p32
      $region34: #{residual_conv_forward.11} parent=31 // pred_check_branch
        %207 = sbr.rel (%p205) target = $region36
      $region35: #{residual_conv_forward.11} parent=31 // pred_region
        %s208 = smul.u32 32, %s12
        %p209 = scmp.lt.s32.totalorder %s208, 127
        %s210 = scalar_select %p209, %s208, 127
        %s211 = smul.addr %s210, 2
        %s212 = smul.addr %s211, 4
        %s213 = scalar_lea.vmem %s0, %s212
        %s214 = smul.u32 32, %s12
      $region36: #{residual_conv_forward.11} parent=31 // pred_fallthru
        _
      // Predicated region
      $region37: #{residual_conv_forward.11} parent=31 // pred_check
        %p215 = pneg %p100
      $region38: #{residual_conv_forward.11} parent=31 // pred_check_branch
        %217 = sbr.rel (%p215) target = $region40
      $region39: #{residual_conv_forward.11} parent=31 // pred_region
        %s218 = smul.u32 32, %s12
        %p219 = scmp.lt.s32.totalorder %s218, 127
        %s220 = scalar_select %p219, %s218, 127
        %s221 = smul.addr %s220, 4
        %s222 = scalar_lea.vmem %s3, %s221
        %s223 = smul.u32 32, %s12
      $region40: #{residual_conv_forward.11} parent=31 // pred_fallthru
        _
    $region32: #{residual_conv_forward.11} parent=5 // pred_fallthru
      _
    %p224 = scmp.le.s32.totalorder 1, %s12
    %p225 = scmp.lt.s32.totalorder %s12, 5
    %p226 = pnand %p224, %p225
    %p227 = pneg %p226
    // Predicated region
    $region41: #{residual_conv_forward.11} parent=5 // pred_check
      _
    $region42: #{residual_conv_forward.11} parent=5 // pred_check_branch
      %229 = sbr.rel (%p226) target = $region44
    $region43: #{residual_conv_forward.11} parent=5 // pred_region
      %s230 = ssub.s32 %s12, 1
      %s231 = smul.u32 32, %s17
      %p232 = scmp.lt.s32.totalorder %s231, 127
      %s233 = scalar_select %p232, %s231, 127
      %s234 = smul.addr %s233, 2
      %s235 = smul.addr %s234, 4
      %s236 = scalar_lea.vmem %s0, %s235
      %p237 = pneg %p38
      %p238 = pneg %p35
      %p239 = pneg %p59
      %p240 = pneg %p56
      %p241 = pneg %p80
      %p242 = pneg %p77
      %s243 = smul.u32 32, %s17
      %p244 = scmp.lt.s32.totalorder %s243, 127
      %s245 = scalar_select %p244, %s243, 127
      %s246 = smul.addr %s245, 4
      %s247 = scalar_lea.vmem %s3, %s246
      %p248 = pneg %p106
      %p249 = pneg %p103
      %p250 = pneg %p127
      %p251 = pneg %p124
      %p252 = pneg %p148
      %p253 = pneg %p145
      %p254 = pneg %p174
      %p255 = pneg %p171
      %s256 = smul.u32 32, %s17
      %p257 = scmp.lt.s32.totalorder %s256, 127
      %s258 = scalar_select %p257, %s256, 127
      %s259 = smul.addr %s258, 8
      %s260 = scalar_lea.vmem %s6, %s259
      %s261 = smul.u32 32, %s17
      %p262 = scmp.lt.s32.totalorder %s261, 127
      %s263 = scalar_select %p262, %s261, 127
      %s264 = smul.addr %s263, 2
      %s265 = smul.addr %s264, 4
      %s266 = scalar_lea.vmem %s0, %s265
      %s267 = smul.u32 32, %s17
      %s268 = smul.u32 32, %s17
      %p269 = scmp.lt.s32.totalorder %s268, 127
      %s270 = scalar_select %p269, %s268, 127
      %s271 = smul.addr %s270, 4
      %s272 = scalar_lea.vmem %s3, %s271
      %s273 = smul.u32 32, %s17
      %s274 = smul.u32 32, %s17
      %p275 = scmp.lt.s32.totalorder %s274, 127
      %s276 = scalar_select %p275, %s274, 127
      %s277 = smul.addr %s276, 8
      %s278 = scalar_lea.vmem %s6, %s277
      %s279 = smul.u32 32, %s17
      %v281 = vld [vmem:[%s266] sm:$0xff]
      %v282 = vld [vmem:[%s266 + $0x8] sm:$0xff]
      %v283 = vld [vmem:[%s266 + $0x10] sm:$0xff]
      %v284 = vld [vmem:[%s266 + $0x18] sm:$0xff]
      %v285 = vld [vmem:[%s266 + $0x20] sm:$0xff]
      %v286 = vld [vmem:[%s266 + $0x28] sm:$0xff]
      %v287 = vld [vmem:[%s266 + $0x30] sm:$0xff]
      %v288 = vld [vmem:[%s266 + $0x38] sm:$0xff]
      %v289 = vld [vmem:[%s266 + $0x40] sm:$0xff]
      %v290 = vld [vmem:[%s266 + $0x48] sm:$0xff]
      %v291 = vld [vmem:[%s266 + $0x50] sm:$0xff]
      %v292 = vld [vmem:[%s266 + $0x58] sm:$0xff]
      %v293 = vld [vmem:[%s266 + $0x60] sm:$0xff]
      %v294 = vld [vmem:[%s266 + $0x68] sm:$0xff]
      %v295 = vld [vmem:[%s266 + $0x70] sm:$0xff]
      %v296 = vld [vmem:[%s266 + $0x78] sm:$0xff]
      %v297 = vld [vmem:[%s266 + $0x80] sm:$0xff]
      %v298 = vld [vmem:[%s266 + $0x88] sm:$0xff]
      %v299 = vld [vmem:[%s266 + $0x90] sm:$0xff]
      %v300 = vld [vmem:[%s266 + $0x98] sm:$0xff]
      %v301 = vld [vmem:[%s266 + $0xa0] sm:$0xff]
      %v302 = vld [vmem:[%s266 + $0xa8] sm:$0xff]
      %v303 = vld [vmem:[%s266 + $0xb0] sm:$0xff]
      %v304 = vld [vmem:[%s266 + $0xb8] sm:$0xff]
      %v305 = vld [vmem:[%s266 + $0xc0] sm:$0xff]
      %v306 = vld [vmem:[%s266 + $0xc8] sm:$0xff]
      %v307 = vld [vmem:[%s266 + $0xd0] sm:$0xff]
      %v308 = vld [vmem:[%s266 + $0xd8] sm:$0xff]
      %v309 = vld [vmem:[%s266 + $0xe0] sm:$0xff]
      %v310 = vld [vmem:[%s266 + $0xe8] sm:$0xff]
      %v311 = vld [vmem:[%s266 + $0xf0] sm:$0xff]
      %v312 = vld [vmem:[%s266 + $0xf8] sm:$0xff]
      %v313 = vld [vmem:[%s1] sm:$0xf]
      %v314 = vld [vmem:[%s1 + $0x4] sm:$0xf]
      %v315 = vld [vmem:[%s1 + $0x8] sm:$0xf]
      %v316 = vld [vmem:[%s1 + $0xc] sm:$0xf]
      %v317 = vld [vmem:[%s1 + $0x10] sm:$0xf]
      %v318 = vld [vmem:[%s1 + $0x14] sm:$0xf]
      %v319 = vld [vmem:[%s1 + $0x18] sm:$0xf]
      %v320 = vld [vmem:[%s1 + $0x1c] sm:$0xf]
      %v321 = vld [vmem:[%s1 + $0x20] sm:$0xf]
      %v322 = vld [vmem:[%s1 + $0x24] sm:$0xf]
      %v323 = vld [vmem:[%s1 + $0x28] sm:$0xf]
      %v324 = vld [vmem:[%s1 + $0x2c] sm:$0xf]
      %v325 = vld [vmem:[%s1 + $0x30] sm:$0xf]
      %v326 = vld [vmem:[%s1 + $0x34] sm:$0xf]
      %v327 = vld [vmem:[%s1 + $0x38] sm:$0xf]
      %v328 = vld [vmem:[%s1 + $0x3c] sm:$0xf]
      %v329 = vld [vmem:[%s1 + $0x40] sm:$0xf]
      %v330 = vld [vmem:[%s1 + $0x44] sm:$0xf]
      %v331 = vld [vmem:[%s1 + $0x48] sm:$0xf]
      %v332 = vld [vmem:[%s1 + $0x4c] sm:$0xf]
      %v333 = vld [vmem:[%s1 + $0x50] sm:$0xf]
      %v334 = vld [vmem:[%s1 + $0x54] sm:$0xf]
      %v335 = vld [vmem:[%s1 + $0x58] sm:$0xf]
      %v336 = vld [vmem:[%s1 + $0x5c] sm:$0xf]
      %v337 = vld [vmem:[%s1 + $0x60] sm:$0xf]
      %v338 = vld [vmem:[%s1 + $0x64] sm:$0xf]
      %v339 = vld [vmem:[%s1 + $0x68] sm:$0xf]
      %v340 = vld [vmem:[%s272] sm:$0xf]
      %v341 = vld [vmem:[%s272 + $0x4] sm:$0xf]
      %v342 = vld [vmem:[%s272 + $0x8] sm:$0xf]
      %v343 = vld [vmem:[%s272 + $0xc] sm:$0xf]
      %v344 = vld [vmem:[%s272 + $0x10] sm:$0xf]
      %v345 = vld [vmem:[%s272 + $0x14] sm:$0xf]
      %v346 = vld [vmem:[%s272 + $0x18] sm:$0xf]
      %v347 = vld [vmem:[%s272 + $0x1c] sm:$0xf]
      %v348 = vld [vmem:[%s272 + $0x20] sm:$0xf]
      %v349 = vld [vmem:[%s272 + $0x24] sm:$0xf]
      %v350 = vld [vmem:[%s272 + $0x28] sm:$0xf]
      %v351 = vld [vmem:[%s272 + $0x2c] sm:$0xf]
      %v352 = vld [vmem:[%s272 + $0x30] sm:$0xf]
      %v353 = vld [vmem:[%s272 + $0x34] sm:$0xf]
      %v354 = vld [vmem:[%s272 + $0x38] sm:$0xf]
      %v355 = vld [vmem:[%s272 + $0x3c] sm:$0xf]
      %v356 = vld [vmem:[%s272 + $0x40] sm:$0xf]
      %v357 = vld [vmem:[%s272 + $0x44] sm:$0xf]
      %v358 = vld [vmem:[%s272 + $0x48] sm:$0xf]
      %v359 = vld [vmem:[%s272 + $0x4c] sm:$0xf]
      %v360 = vld [vmem:[%s272 + $0x50] sm:$0xf]
      %v361 = vld [vmem:[%s272 + $0x54] sm:$0xf]
      %v362 = vld [vmem:[%s272 + $0x58] sm:$0xf]
      %v363 = vld [vmem:[%s272 + $0x5c] sm:$0xf]
      %v364 = vld [vmem:[%s272 + $0x60] sm:$0xf]
      %v365 = vld [vmem:[%s272 + $0x64] sm:$0xf]
      %v366 = vld [vmem:[%s272 + $0x68] sm:$0xf]
      %v367 = vld [vmem:[%s272 + $0x6c] sm:$0xf]
      %v368 = vld [vmem:[%s272 + $0x70] sm:$0xf]
      %v369 = vld [vmem:[%s272 + $0x74] sm:$0xf]
      %v370 = vld [vmem:[%s272 + $0x78] sm:$0xf]
      %v371 = vld [vmem:[%s272 + $0x7c] sm:$0xf]
      %v372 = vunpack.c.l.bf16 %v340
      %v373 = vunpack.c.l.bf16 %v341
      %v374 = vunpack.c.l.bf16 %v342
      %v375 = vunpack.c.l.bf16 %v343
      %v376 = vunpack.c.l.bf16 %v344
      %v377 = vunpack.c.l.bf16 %v345
      %v378 = vunpack.c.l.bf16 %v346
      %v379 = vunpack.c.l.bf16 %v347
      %v380 = vunpack.c.l.bf16 %v348
      %v381 = vunpack.c.l.bf16 %v349
      %v382 = vunpack.c.l.bf16 %v350
      %v383 = vunpack.c.l.bf16 %v351
      %v384 = vunpack.c.l.bf16 %v352
      %v385 = vunpack.c.l.bf16 %v353
      %v386 = vunpack.c.l.bf16 %v354
      %v387 = vunpack.c.l.bf16 %v355
      %v388 = vunpack.c.l.bf16 %v356
      %v389 = vunpack.c.l.bf16 %v357
      %v390 = vunpack.c.l.bf16 %v358
      %v391 = vunpack.c.l.bf16 %v359
      %v392 = vunpack.c.l.bf16 %v360
      %v393 = vunpack.c.l.bf16 %v361
      %v394 = vunpack.c.l.bf16 %v362
      %v395 = vunpack.c.l.bf16 %v363
      %v396 = vunpack.c.l.bf16 %v364
      %v397 = vunpack.c.l.bf16 %v365
      %v398 = vunpack.c.l.bf16 %v366
      %v399 = vunpack.c.l.bf16 %v367
      %v400 = vunpack.c.l.bf16 %v368
      %v401 = vunpack.c.l.bf16 %v369
      %v402 = vunpack.c.l.bf16 %v370
      %v403 = vunpack.c.l.bf16 %v371
      %v404 = vld [vmem:[%s4] sm:$0x1]
      %v406 = vperm.slane %v404, 0
      %v408 = vmul.f32 %v372, %v406
      %v409 = vmul.f32 %v373, %v406
      %v410 = vmul.f32 %v374, %v406
      %v411 = vmul.f32 %v375, %v406
      %v412 = vmul.f32 %v376, %v406
      %v413 = vmul.f32 %v377, %v406
      %v414 = vmul.f32 %v378, %v406
      %v415 = vmul.f32 %v379, %v406
      %v416 = vmul.f32 %v380, %v406
      %v417 = vmul.f32 %v381, %v406
      %v418 = vmul.f32 %v382, %v406
      %v419 = vmul.f32 %v383, %v406
      %v420 = vmul.f32 %v384, %v406
      %v421 = vmul.f32 %v385, %v406
      %v422 = vmul.f32 %v386, %v406
      %v423 = vmul.f32 %v387, %v406
      %v424 = vmul.f32 %v388, %v406
      %v425 = vmul.f32 %v389, %v406
      %v426 = vmul.f32 %v390, %v406
      %v427 = vmul.f32 %v391, %v406
      %v428 = vmul.f32 %v392, %v406
      %v429 = vmul.f32 %v393, %v406
      %v430 = vmul.f32 %v394, %v406
      %v431 = vmul.f32 %v395, %v406
      %v432 = vmul.f32 %v396, %v406
      %v433 = vmul.f32 %v397, %v406
      %v434 = vmul.f32 %v398, %v406
      %v435 = vmul.f32 %v399, %v406
      %v436 = vmul.f32 %v400, %v406
      %v437 = vmul.f32 %v401, %v406
      %v438 = vmul.f32 %v402, %v406
      %v439 = vmul.f32 %v403, %v406
      %v440 = vld [vmem:[%s5] sm:$0x1]
      %v442 = vperm.slane %v440, 0
      %v444 = vadd.f32 %v408, %v442
      %v445 = vadd.f32 %v409, %v442
      %v446 = vadd.f32 %v410, %v442
      %v447 = vadd.f32 %v411, %v442
      %v448 = vadd.f32 %v412, %v442
      %v449 = vadd.f32 %v413, %v442
      %v450 = vadd.f32 %v414, %v442
      %v451 = vadd.f32 %v415, %v442
      %v452 = vadd.f32 %v416, %v442
      %v453 = vadd.f32 %v417, %v442
      %v454 = vadd.f32 %v418, %v442
      %v455 = vadd.f32 %v419, %v442
      %v456 = vadd.f32 %v420, %v442
      %v457 = vadd.f32 %v421, %v442
      %v458 = vadd.f32 %v422, %v442
      %v459 = vadd.f32 %v423, %v442
      %v460 = vadd.f32 %v424, %v442
      %v461 = vadd.f32 %v425, %v442
      %v462 = vadd.f32 %v426, %v442
      %v463 = vadd.f32 %v427, %v442
      %v464 = vadd.f32 %v428, %v442
      %v465 = vadd.f32 %v429, %v442
      %v466 = vadd.f32 %v430, %v442
      %v467 = vadd.f32 %v431, %v442
      %v468 = vadd.f32 %v432, %v442
      %v469 = vadd.f32 %v433, %v442
      %v470 = vadd.f32 %v434, %v442
      %v471 = vadd.f32 %v435, %v442
      %v472 = vadd.f32 %v436, %v442
      %v473 = vadd.f32 %v437, %v442
      %v474 = vadd.f32 %v438, %v442
      %v475 = vadd.f32 %v439, %v442
      %v476 = vld [vmem:[%s2] sm:$0x1]
      %v478 = vperm.slane %v476, 0
      %v512 = vunpack.c.l.b16 %v281
      %v513 = vunpack.c.h.b16 %v281
      %v514 = vunpack.c.l.b16 %v282
      %v515 = vunpack.c.h.b16 %v282
      %v516 = vunpack.c.l.b16 %v283
      %v517 = vunpack.c.h.b16 %v283
      %v518 = vunpack.c.l.b16 %v284
      %v519 = vunpack.c.h.b16 %v284
      %v520 = vunpack.c.l.b16 %v285
      %v521 = vunpack.c.h.b16 %v285
      %v522 = vunpack.c.l.b16 %v286
      %v523 = vunpack.c.h.b16 %v286
      %v524 = vunpack.c.l.b16 %v287
      %v525 = vunpack.c.h.b16 %v287
      %v526 = vunpack.c.l.b16 %v288
      %v527 = vunpack.c.h.b16 %v288
      %v528 = vunpack.c.l.b16 %v289
      %v529 = vunpack.c.h.b16 %v289
      %v530 = vunpack.c.l.b16 %v290
      %v531 = vunpack.c.h.b16 %v290
      %v532 = vunpack.c.l.b16 %v291
      %v533 = vunpack.c.h.b16 %v291
      %v534 = vunpack.c.l.b16 %v292
      %v535 = vunpack.c.h.b16 %v292
      %v536 = vunpack.c.l.b16 %v293
      %v537 = vunpack.c.h.b16 %v293
      %v538 = vunpack.c.l.b16 %v294
      %v539 = vunpack.c.h.b16 %v294
      %v540 = vunpack.c.l.b16 %v295
      %v541 = vunpack.c.h.b16 %v295
      %v542 = vunpack.c.l.b16 %v296
      %v543 = vunpack.c.h.b16 %v296
      %v544 = vunpack.c.l.b16 %v297
      %v545 = vunpack.c.h.b16 %v297
      %v546 = vunpack.c.l.b16 %v298
      %v547 = vunpack.c.h.b16 %v298
      %v548 = vunpack.c.l.b16 %v299
      %v549 = vunpack.c.h.b16 %v299
      %v550 = vunpack.c.l.b16 %v300
      %v551 = vunpack.c.h.b16 %v300
      %v552 = vunpack.c.l.b16 %v301
      %v553 = vunpack.c.h.b16 %v301
      %v554 = vunpack.c.l.b16 %v302
      %v555 = vunpack.c.h.b16 %v302
      %v556 = vunpack.c.l.b16 %v303
      %v557 = vunpack.c.h.b16 %v303
      %v558 = vunpack.c.l.b16 %v304
      %v559 = vunpack.c.h.b16 %v304
      %v560 = vunpack.c.l.b16 %v305
      %v561 = vunpack.c.h.b16 %v305
      %v562 = vunpack.c.l.b16 %v306
      %v563 = vunpack.c.h.b16 %v306
      %v564 = vunpack.c.l.b16 %v307
      %v565 = vunpack.c.h.b16 %v307
      %v566 = vunpack.c.l.b16 %v308
      %v567 = vunpack.c.h.b16 %v308
      %v568 = vunpack.c.l.b16 %v309
      %v569 = vunpack.c.h.b16 %v309
      %v570 = vunpack.c.l.b16 %v310
      %v571 = vunpack.c.h.b16 %v310
      %v572 = vunpack.c.l.b16 %v311
      %v573 = vunpack.c.h.b16 %v311
      %v574 = vunpack.c.l.b16 %v312
      %v575 = vunpack.c.h.b16 %v312
      %v576 = vpack.c.b16 %v514, %v512
      %v577 = vpack.c.b16 %v515, %v513
      %v578 = vpack.c.b16 %v518, %v516
      %v579 = vpack.c.b16 %v519, %v517
      %v580 = vpack.c.b16 %v522, %v520
      %v581 = vpack.c.b16 %v523, %v521
      %v582 = vpack.c.b16 %v526, %v524
      %v583 = vpack.c.b16 %v527, %v525
      %v584 = vpack.c.b16 %v530, %v528
      %v585 = vpack.c.b16 %v531, %v529
      %v586 = vpack.c.b16 %v534, %v532
      %v587 = vpack.c.b16 %v535, %v533
      %v588 = vpack.c.b16 %v538, %v536
      %v589 = vpack.c.b16 %v539, %v537
      %v590 = vpack.c.b16 %v542, %v540
      %v591 = vpack.c.b16 %v543, %v541
      %v592 = vpack.c.b16 %v546, %v544
      %v593 = vpack.c.b16 %v547, %v545
      %v594 = vpack.c.b16 %v550, %v548
      %v595 = vpack.c.b16 %v551, %v549
      %v596 = vpack.c.b16 %v554, %v552
      %v597 = vpack.c.b16 %v555, %v553
      %v598 = vpack.c.b16 %v558, %v556
      %v599 = vpack.c.b16 %v559, %v557
      %v600 = vpack.c.b16 %v562, %v560
      %v601 = vpack.c.b16 %v563, %v561
      %v602 = vpack.c.b16 %v566, %v564
      %v603 = vpack.c.b16 %v567, %v565
      %v604 = vpack.c.b16 %v570, %v568
      %v605 = vpack.c.b16 %v571, %v569
      %v606 = vpack.c.b16 %v574, %v572
      %v607 = vpack.c.b16 %v575, %v573
      %v651 = vunpack.c.l.b16 %v313
      %v652 = vunpack.c.l.b16 %v314
      %v653 = vunpack.c.l.b16 %v315
      %v654 = vunpack.c.l.b16 %v316
      %v655 = vunpack.c.l.b16 %v317
      %v656 = vunpack.c.l.b16 %v318
      %v657 = vunpack.c.l.b16 %v319
      %v658 = vunpack.c.l.b16 %v320
      %v659 = vunpack.c.l.b16 %v321
      %v660 = vunpack.c.l.b16 %v322
      %v661 = vunpack.c.l.b16 %v323
      %v662 = vunpack.c.l.b16 %v324
      %v663 = vunpack.c.l.b16 %v325
      %v664 = vunpack.c.l.b16 %v326
      %v665 = vunpack.c.l.b16 %v327
      %v666 = vunpack.c.l.b16 %v328
      %v667 = vunpack.c.l.b16 %v329
      %v668 = vunpack.c.l.b16 %v330
      %v669 = vunpack.c.l.b16 %v331
      %v670 = vunpack.c.l.b16 %v332
      %v671 = vunpack.c.l.b16 %v333
      %v672 = vunpack.c.l.b16 %v334
      %v673 = vunpack.c.l.b16 %v335
      %v674 = vunpack.c.l.b16 %v336
      %v675 = vunpack.c.l.b16 %v337
      %v676 = vunpack.c.l.b16 %v338
      %v677 = vunpack.c.l.b16 %v339
      %v678 = vpack.c.b16 %v652, %v651
      %v679 = vpack.c.b16 %v654, %v653
      %v680 = vpack.c.b16 %v656, %v655
      %v681 = vpack.c.b16 %v658, %v657
      %v682 = vpack.c.b16 %v660, %v659
      %v683 = vpack.c.b16 %v662, %v661
      %v684 = vpack.c.b16 %v664, %v663
      %v685 = vpack.c.b16 %v666, %v665
      %v686 = vpack.c.b16 %v668, %v667
      %v687 = vpack.c.b16 %v670, %v669
      %v688 = vpack.c.b16 %v672, %v671
      %v689 = vpack.c.b16 %v674, %v673
      %v690 = vpack.c.b16 %v676, %v675
      %v691 = vpack.c.b16 %v677, %v677
      %vm705 = vcmask 719872
      %v707 = vsel %vm705, %v577, 0
      %v710 = vsel %vm705, %v579, 0
      %v713 = vsel %vm705, %v581, 0
      %v716 = vsel %vm705, %v583, 0
      %v719 = vsel %vm705, %v585, 0
      %v722 = vsel %vm705, %v587, 0
      %v725 = vsel %vm705, %v589, 0
      %v728 = vsel %vm705, %v591, 0
      %v731 = vsel %vm705, %v593, 0
      %v734 = vsel %vm705, %v595, 0
      %v737 = vsel %vm705, %v597, 0
      %v740 = vsel %vm705, %v599, 0
      %v743 = vsel %vm705, %v601, 0
      %v746 = vsel %vm705, %v603, 0
      %v749 = vsel %vm705, %v605, 0
      %v752 = vsel %vm705, %v607, 0
      %vm754 = vcmask 1043456
      %v756 = vsel %vm754, %v691, 0
      %758 = vmatpush.bf16.msra.mxu0 %v685
      %759 = vmatpush.bf16.msra.mxu0 %v684
      %760 = vmatpush.bf16.msra.mxu0 %v683
      %761 = vmatpush.bf16.msra.mxu0 %v682
      %762 = vmatpush.bf16.msra.mxu0 %v681
      %763 = vmatpush.bf16.msra.mxu0 %v680
      %764 = vmatpush.bf16.msra.mxu0 %v679
      %765 = vmatpush.bf16.msra.mxu0 %v678
      %766 = vmatmul.bf16.gmra.mxu0 %v576
      %v767 = vpop.f32.mrf.mxu0
      %v768 = vadd.f32 %v478, %v767
      %v769 = vpop.f32.mrf.mxu0
      %v770 = vadd.f32 %v478, %v769
      %771 = vmatmul.bf16.gmra.mxu0 %v578
      %v772 = vpop.f32.mrf.mxu0
      %v773 = vadd.f32 %v478, %v772
      %v774 = vpop.f32.mrf.mxu0
      %v775 = vadd.f32 %v478, %v774
      %776 = vmatmul.bf16.gmra.mxu0 %v580
      %v777 = vpop.f32.mrf.mxu0
      %v778 = vadd.f32 %v478, %v777
      %v779 = vpop.f32.mrf.mxu0
      %v780 = vadd.f32 %v478, %v779
      %781 = vmatmul.bf16.gmra.mxu0 %v582
      %v782 = vpop.f32.mrf.mxu0
      %v783 = vadd.f32 %v478, %v782
      %v784 = vpop.f32.mrf.mxu0
      %v785 = vadd.f32 %v478, %v784
      %786 = vmatmul.bf16.gmra.mxu0 %v584
      %v787 = vpop.f32.mrf.mxu0
      %v788 = vadd.f32 %v478, %v787
      %v789 = vpop.f32.mrf.mxu0
      %v790 = vadd.f32 %v478, %v789
      %791 = vmatmul.bf16.gmra.mxu0 %v586
      %v792 = vpop.f32.mrf.mxu0
      %v793 = vadd.f32 %v478, %v792
      %v794 = vpop.f32.mrf.mxu0
      %v795 = vadd.f32 %v478, %v794
      %796 = vmatmul.bf16.gmra.mxu0 %v588
      %v797 = vpop.f32.mrf.mxu0
      %v798 = vadd.f32 %v478, %v797
      %v799 = vpop.f32.mrf.mxu0
      %v800 = vadd.f32 %v478, %v799
      %801 = vmatmul.bf16.gmra.mxu0 %v590
      %v802 = vpop.f32.mrf.mxu0
      %v803 = vadd.f32 %v478, %v802
      %v804 = vpop.f32.mrf.mxu0
      %v805 = vadd.f32 %v478, %v804
      %806 = vmatmul.bf16.gmra.mxu0 %v592
      %v807 = vpop.f32.mrf.mxu0
      %v808 = vadd.f32 %v478, %v807
      %v809 = vpop.f32.mrf.mxu0
      %v810 = vadd.f32 %v478, %v809
      %811 = vmatmul.bf16.gmra.mxu0 %v594
      %v812 = vpop.f32.mrf.mxu0
      %v813 = vadd.f32 %v478, %v812
      %v814 = vpop.f32.mrf.mxu0
      %v815 = vadd.f32 %v478, %v814
      %816 = vmatmul.bf16.gmra.mxu0 %v596
      %v817 = vpop.f32.mrf.mxu0
      %v818 = vadd.f32 %v478, %v817
      %v819 = vpop.f32.mrf.mxu0
      %v820 = vadd.f32 %v478, %v819
      %821 = vmatmul.bf16.gmra.mxu0 %v598
      %v822 = vpop.f32.mrf.mxu0
      %v823 = vadd.f32 %v478, %v822
      %v824 = vpop.f32.mrf.mxu0
      %v825 = vadd.f32 %v478, %v824
      %826 = vmatmul.bf16.gmra.mxu0 %v600
      %v827 = vpop.f32.mrf.mxu0
      %v828 = vadd.f32 %v478, %v827
      %v829 = vpop.f32.mrf.mxu0
      %v830 = vadd.f32 %v478, %v829
      %831 = vmatmul.bf16.gmra.mxu0 %v602
      %v832 = vpop.f32.mrf.mxu0
      %v833 = vadd.f32 %v478, %v832
      %v834 = vpop.f32.mrf.mxu0
      %v835 = vadd.f32 %v478, %v834
      %836 = vmatmul.bf16.gmra.mxu0 %v604
      %v837 = vpop.f32.mrf.mxu0
      %v838 = vadd.f32 %v478, %v837
      %v839 = vpop.f32.mrf.mxu0
      %v840 = vadd.f32 %v478, %v839
      %841 = vmatmul.bf16.gmra.mxu0 %v606
      %v842 = vpop.f32.mrf.mxu0
      %v843 = vadd.f32 %v478, %v842
      %v844 = vpop.f32.mrf.mxu0
      %v845 = vadd.f32 %v478, %v844
      %846 = vdwg.mxu0
      %847 = vmatpush.bf16.msra.mxu0 0
      %848 = vmatpush.bf16.msra.mxu0 0
      %849 = vmatpush.bf16.msra.mxu0 %v756
      %850 = vmatpush.bf16.msra.mxu0 %v690
      %851 = vmatpush.bf16.msra.mxu0 %v689
      %852 = vmatpush.bf16.msra.mxu0 %v688
      %853 = vmatpush.bf16.msra.mxu0 %v687
      %854 = vmatpush.bf16.msra.mxu0 %v686
      %855 = vmatmul.bf16.gmra.mxu0 %v707
      %v856 = vpop.f32.mrf.mxu0
      %v857 = vadd.f32 %v768, %v856
      %v858 = vpop.f32.mrf.mxu0
      %v859 = vadd.f32 %v770, %v858
      %860 = vmatmul.bf16.gmra.mxu0 %v710
      %v861 = vpop.f32.mrf.mxu0
      %v862 = vadd.f32 %v773, %v861
      %v863 = vpop.f32.mrf.mxu0
      %v864 = vadd.f32 %v775, %v863
      %865 = vmatmul.bf16.gmra.mxu0 %v713
      %v866 = vpop.f32.mrf.mxu0
      %v867 = vadd.f32 %v778, %v866
      %v868 = vpop.f32.mrf.mxu0
      %v869 = vadd.f32 %v780, %v868
      %870 = vmatmul.bf16.gmra.mxu0 %v716
      %v871 = vpop.f32.mrf.mxu0
      %v872 = vadd.f32 %v783, %v871
      %v873 = vpop.f32.mrf.mxu0
      %v874 = vadd.f32 %v785, %v873
      %875 = vmatmul.bf16.gmra.mxu0 %v719
      %v876 = vpop.f32.mrf.mxu0
      %v877 = vadd.f32 %v788, %v876
      %v878 = vpop.f32.mrf.mxu0
      %v879 = vadd.f32 %v790, %v878
      %880 = vmatmul.bf16.gmra.mxu0 %v722
      %v881 = vpop.f32.mrf.mxu0
      %v882 = vadd.f32 %v793, %v881
      %v883 = vpop.f32.mrf.mxu0
      %v884 = vadd.f32 %v795, %v883
      %885 = vmatmul.bf16.gmra.mxu0 %v725
      %v886 = vpop.f32.mrf.mxu0
      %v887 = vadd.f32 %v798, %v886
      %v888 = vpop.f32.mrf.mxu0
      %v889 = vadd.f32 %v800, %v888
      %890 = vmatmul.bf16.gmra.mxu0 %v728
      %v891 = vpop.f32.mrf.mxu0
      %v892 = vadd.f32 %v803, %v891
      %v893 = vpop.f32.mrf.mxu0
      %v894 = vadd.f32 %v805, %v893
      %895 = vmatmul.bf16.gmra.mxu0 %v731
      %v896 = vpop.f32.mrf.mxu0
      %v897 = vadd.f32 %v808, %v896
      %v898 = vpop.f32.mrf.mxu0
      %v899 = vadd.f32 %v810, %v898
      %900 = vmatmul.bf16.gmra.mxu0 %v734
      %v901 = vpop.f32.mrf.mxu0
      %v902 = vadd.f32 %v813, %v901
      %v903 = vpop.f32.mrf.mxu0
      %v904 = vadd.f32 %v815, %v903
      %905 = vmatmul.bf16.gmra.mxu0 %v737
      %v906 = vpop.f32.mrf.mxu0
      %v907 = vadd.f32 %v818, %v906
      %v908 = vpop.f32.mrf.mxu0
      %v909 = vadd.f32 %v820, %v908
      %910 = vmatmul.bf16.gmra.mxu0 %v740
      %v911 = vpop.f32.mrf.mxu0
      %v912 = vadd.f32 %v823, %v911
      %v913 = vpop.f32.mrf.mxu0
      %v914 = vadd.f32 %v825, %v913
      %915 = vmatmul.bf16.gmra.mxu0 %v743
      %v916 = vpop.f32.mrf.mxu0
      %v917 = vadd.f32 %v828, %v916
      %v918 = vpop.f32.mrf.mxu0
      %v919 = vadd.f32 %v830, %v918
      %920 = vmatmul.bf16.gmra.mxu0 %v746
      %v921 = vpop.f32.mrf.mxu0
      %v922 = vadd.f32 %v833, %v921
      %v923 = vpop.f32.mrf.mxu0
      %v924 = vadd.f32 %v835, %v923
      %925 = vmatmul.bf16.gmra.mxu0 %v749
      %v926 = vpop.f32.mrf.mxu0
      %v927 = vadd.f32 %v838, %v926
      %v928 = vpop.f32.mrf.mxu0
      %v929 = vadd.f32 %v840, %v928
      %930 = vmatmul.bf16.gmra.mxu0 %v752
      %v931 = vpop.f32.mrf.mxu0
      %v932 = vadd.f32 %v843, %v931
      %v933 = vpop.f32.mrf.mxu0
      %v934 = vadd.f32 %v845, %v933
      %935 = vdwg.mxu0
      %v936 = vadd.f32 %v857, %v444
      %v937 = vadd.f32 %v859, %v445
      %v938 = vadd.f32 %v862, %v446
      %v939 = vadd.f32 %v864, %v447
      %v940 = vadd.f32 %v867, %v448
      %v941 = vadd.f32 %v869, %v449
      %v942 = vadd.f32 %v872, %v450
      %v943 = vadd.f32 %v874, %v451
      %v944 = vadd.f32 %v877, %v452
      %v945 = vadd.f32 %v879, %v453
      %v946 = vadd.f32 %v882, %v454
      %v947 = vadd.f32 %v884, %v455
      %v948 = vadd.f32 %v887, %v456
      %v949 = vadd.f32 %v889, %v457
      %v950 = vadd.f32 %v892, %v458
      %v951 = vadd.f32 %v894, %v459
      %v952 = vadd.f32 %v897, %v460
      %v953 = vadd.f32 %v899, %v461
      %v954 = vadd.f32 %v902, %v462
      %v955 = vadd.f32 %v904, %v463
      %v956 = vadd.f32 %v907, %v464
      %v957 = vadd.f32 %v909, %v465
      %v958 = vadd.f32 %v912, %v466
      %v959 = vadd.f32 %v914, %v467
      %v960 = vadd.f32 %v917, %v468
      %v961 = vadd.f32 %v919, %v469
      %v962 = vadd.f32 %v922, %v470
      %v963 = vadd.f32 %v924, %v471
      %v964 = vadd.f32 %v927, %v472
      %v965 = vadd.f32 %v929, %v473
      %v966 = vadd.f32 %v932, %v474
      %v967 = vadd.f32 %v934, %v475
      %vm968 = vcmask 64512
      %969 = vst.msk [vmem:[%s278] sm:$0xff] %vm968, %v936
      %970 = vst.msk [vmem:[%s278 + $0x8] sm:$0xff] %vm968, %v937
      %971 = vst.msk [vmem:[%s278 + $0x10] sm:$0xff] %vm968, %v938
      %972 = vst.msk [vmem:[%s278 + $0x18] sm:$0xff] %vm968, %v939
      %973 = vst.msk [vmem:[%s278 + $0x20] sm:$0xff] %vm968, %v940
      %974 = vst.msk [vmem:[%s278 + $0x28] sm:$0xff] %vm968, %v941
      %975 = vst.msk [vmem:[%s278 + $0x30] sm:$0xff] %vm968, %v942
      %976 = vst.msk [vmem:[%s278 + $0x38] sm:$0xff] %vm968, %v943
      %977 = vst.msk [vmem:[%s278 + $0x40] sm:$0xff] %vm968, %v944
      %978 = vst.msk [vmem:[%s278 + $0x48] sm:$0xff] %vm968, %v945
      %979 = vst.msk [vmem:[%s278 + $0x50] sm:$0xff] %vm968, %v946
      %980 = vst.msk [vmem:[%s278 + $0x58] sm:$0xff] %vm968, %v947
      %981 = vst.msk [vmem:[%s278 + $0x60] sm:$0xff] %vm968, %v948
      %982 = vst.msk [vmem:[%s278 + $0x68] sm:$0xff] %vm968, %v949
      %983 = vst.msk [vmem:[%s278 + $0x70] sm:$0xff] %vm968, %v950
      %984 = vst.msk [vmem:[%s278 + $0x78] sm:$0xff] %vm968, %v951
      %985 = vst.msk [vmem:[%s278 + $0x80] sm:$0xff] %vm968, %v952
      %986 = vst.msk [vmem:[%s278 + $0x88] sm:$0xff] %vm968, %v953
      %987 = vst.msk [vmem:[%s278 + $0x90] sm:$0xff] %vm968, %v954
      %988 = vst.msk [vmem:[%s278 + $0x98] sm:$0xff] %vm968, %v955
      %989 = vst.msk [vmem:[%s278 + $0xa0] sm:$0xff] %vm968, %v956
      %990 = vst.msk [vmem:[%s278 + $0xa8] sm:$0xff] %vm968, %v957
      %991 = vst.msk [vmem:[%s278 + $0xb0] sm:$0xff] %vm968, %v958
      %992 = vst.msk [vmem:[%s278 + $0xb8] sm:$0xff] %vm968, %v959
      %993 = vst.msk [vmem:[%s278 + $0xc0] sm:$0xff] %vm968, %v960
      %994 = vst.msk [vmem:[%s278 + $0xc8] sm:$0xff] %vm968, %v961
      %995 = vst.msk [vmem:[%s278 + $0xd0] sm:$0xff] %vm968, %v962
      %996 = vst.msk [vmem:[%s278 + $0xd8] sm:$0xff] %vm968, %v963
      %997 = vst.msk [vmem:[%s278 + $0xe0] sm:$0xff] %vm968, %v964
      %998 = vst.msk [vmem:[%s278 + $0xe8] sm:$0xff] %vm968, %v965
      %999 = vst.msk [vmem:[%s278 + $0xf0] sm:$0xff] %vm968, %v966
      %1000 = vst.msk [vmem:[%s278 + $0xf8] sm:$0xff] %vm968, %v967
      %s1001 = smul.u32 32, %s17
      %p1002 = scmp.lt.s32.totalorder %s1001, 127
      %s1003 = scalar_select %p1002, %s1001, 127
      %s1004 = smul.addr %s1003, 8
      %s1005 = scalar_lea.vmem %s6, %s1004
      // Predicated region
      $region45: #{residual_conv_forward.11} parent=43 // pred_check
        %p1006 = pneg %p171
      $region46: #{residual_conv_forward.11} parent=43 // pred_check_branch
        %1008 = sbr.rel (%p1006) target = $region48
      $region47: #{residual_conv_forward.11} parent=43 // pred_region
        %s1009 = smul.u32 32, %s17
      $region48: #{residual_conv_forward.11} parent=43 // pred_fallthru
        _
    $region44: #{residual_conv_forward.11} parent=5 // pred_fallthru
      _
    %p1010 = scmp.le.s32.totalorder 2, %s12
    // Predicated region
    $region49: #{residual_conv_forward.11} parent=5 // pred_check
      %p1011 = pneg %p1010
    $region50: #{residual_conv_forward.11} parent=5 // pred_check_branch
      %1013 = sbr.rel (%p1011) target = $region52
    $region51: #{residual_conv_forward.11} parent=5 // pred_region
      %s1014 = ssub.s32 %s12, 2
      // Predicated region
      $region53: #{residual_conv_forward.11} parent=51 // pred_check
        %p1015 = pneg %p177
      $region54: #{residual_conv_forward.11} parent=51 // pred_check_branch
        %1017 = sbr.rel (%p1015) target = $region56
      $region55: #{residual_conv_forward.11} parent=51 // pred_region
        %s1018 = smul.u32 32, %s18
        %p1019 = scmp.lt.s32.totalorder %s1018, 127
        %s1020 = scalar_select %p1019, %s1018, 127
        %s1021 = smul.addr %s1020, 8
        %s1022 = scalar_lea.vmem %s6, %s1021
      $region56: #{residual_conv_forward.11} parent=51 // pred_fallthru
        _
    $region52: #{residual_conv_forward.11} parent=5 // pred_fallthru
      _
  $region6: #{residual_conv_forward.11} parent=0 // loop_footer
    %s16 = sadd.s32 1, %s12
  $region7: #{residual_conv_forward.11} parent=0 // loop_footer_branch
    %11 = sbr.rel target = $region3
  $region8: #{residual_conv_forward.11} parent=0 // loop_exit
    _

</llo_original>
